<compile_context>
chip_gen: v7x
topology: tpu7x:2x2x1
jax: 0.10.0
libtpu: 0.0.40
codegen_flags: <defaults>
</compile_context>

<pallas_src>
import jax
import jax.numpy as jnp
from jax import lax
from jax.experimental import pallas as pl
from jax.experimental.pallas import tpu as pltpu


def _round_up(x, m):
    return (x + m - 1) // m * m


def lstm_kernel(x_ref, len_ref, wg_ref, bg_ref, wh_ref, bh_ref, out_ref):
    # x_ref:   (T, Bp, Ep)      bf16
    # len_ref: (Bp, Hp)         int32 (per-sample length, lane-broadcast)
    # wg_ref:  (Ep + Hp, 4*Hp)  bf16  (fused [W_ih; W_hh], gate order i,f,g,o)
    # bg_ref:  (1, 4*Hp)        f32   (b_ih + b_hh, gate-padded)
    # wh_ref:  (Hp, Pp)         bf16  (fused [w1 | w2], zero padded)
    # bh_ref:  (1, Pp)          f32
    # out_ref: (Bp, Pp)         f32
    T, Bp, Ep = x_ref.shape
    Hp = len_ref.shape[-1]

    # Hoisted out of the time loop: loaded/broadcast exactly once.
    lens = len_ref[...]                                         # (Bp, Hp)
    w_gate = wg_ref[...]                                        # (Ep+Hp, 4Hp)
    bias = jnp.broadcast_to(bg_ref[...], (Bp, 4 * Hp))          # (Bp, 4Hp)

    h0 = jnp.zeros((Bp, Hp), jnp.float32)
    c0 = jnp.zeros((Bp, Hp), jnp.float32)

    def step(t, carry):
        h, c = carry
        x_t = x_ref[t]                                          # (Bp, Ep) bf16
        xh = jnp.concatenate([x_t, h.astype(jnp.bfloat16)], axis=-1)
        gates = jnp.dot(xh, w_gate,
                        preferred_element_type=jnp.float32) + bias
        # PyTorch gate layout [i, f, g, o]; each slice is a full 128-lane slab.
        i_g = jax.nn.sigmoid(gates[:, 0 * Hp:1 * Hp])
        f_g = jax.nn.sigmoid(gates[:, 1 * Hp:2 * Hp])
        g_g = jnp.tanh(gates[:, 2 * Hp:3 * Hp])
        o_g = jax.nn.sigmoid(gates[:, 3 * Hp:4 * Hp])
        c_new = f_g * c + i_g * g_g
        h_new = o_g * jnp.tanh(c_new)
        # pack_padded_sequence semantics: freeze state once t >= length[b].
        live = lens > t
        return (jnp.where(live, h_new, h), jnp.where(live, c_new, c))

    h_n, _ = lax.fori_loop(0, T, step, (h0, c0), unroll=True)

    # Fused dense heads, single MXU op, lane-dense (Pp-wide) output.
    out_ref[...] = (jnp.dot(h_n.astype(jnp.bfloat16), wh_ref[...],
                            preferred_element_type=jnp.float32)
                    + bh_ref[...])


def lstm_forward(text_indices, embedding_matrix, params):
    """Pallas implementation of LSTM.forward((text_indices,))."""
    B, T = text_indices.shape
    E = embedding_matrix.shape[1]
    H = params["w_hh"].shape[0]
    P1 = params["w1"].shape[1]
    P2 = params["w2"].shape[1]

    Bp = _round_up(B, 8)          # full sublane group
    Ep = _round_up(E, 128)        # lane-dense input
    Hp = _round_up(H, 128)        # lane-aligned gate slices
    Pp = _round_up(P1 + P2, 128)  # lane-dense fused head output

    # ---- glue (plain JAX): embedding gather, lengths, padding, weight fusion.
    x = jnp.take(embedding_matrix, text_indices, axis=0)        # (B, T, E)
    x = jnp.transpose(x, (1, 0, 2)).astype(jnp.float32)         # (T, B, E)
    x = jnp.pad(x, ((0, 0), (0, Bp - B), (0, Ep - E))).astype(jnp.bfloat16)

    x_len = jnp.sum(text_indices != 0, axis=-1).astype(jnp.int32)   # (B,)
    lens = jnp.pad(x_len, (0, Bp - B))                               # (Bp,)
    lens = jnp.broadcast_to(lens[:, None], (Bp, Hp)).astype(jnp.int32)

    # Gate weights: pad each of the [i,f,g,o] blocks from H -> Hp, then fuse
    # W_ih (E,4H) and W_hh (H,4H) along the contraction axis.
    wih = params["w_ih"].reshape(E, 4, H)
    wih = jnp.pad(wih, ((0, Ep - E), (0, 0), (0, Hp - H))).reshape(Ep, 4 * Hp)
    whh = params["w_hh"].reshape(H, 4, H)
    whh = jnp.pad(whh, ((0, Hp - H), (0, 0), (0, Hp - H))).reshape(Hp, 4 * Hp)
    w_gate = jnp.concatenate([wih, whh], axis=0).astype(jnp.bfloat16)
    b_gate = jnp.pad(params["b"].reshape(1, 4, H),
                     ((0, 0), (0, 0), (0, Hp - H))
                     ).reshape(1, 4 * Hp).astype(jnp.float32)

    # Fused dense heads, zero-padded to (Hp, Pp).
    w_head = jnp.concatenate([params["w1"], params["w2"]], axis=1)   # (H, P1+P2)
    w_head = jnp.pad(w_head, ((0, Hp - H), (0, Pp - (P1 + P2)))
                     ).astype(jnp.bfloat16)
    b_head = jnp.concatenate([params["b1"], params["b2"]], axis=1)
    b_head = jnp.pad(b_head, ((0, 0), (0, Pp - (P1 + P2)))).astype(jnp.float32)

    out = pl.pallas_call(
        lstm_kernel,
        out_shape=jax.ShapeDtypeStruct((Bp, Pp), jnp.float32),
        in_specs=[pl.BlockSpec(memory_space=pltpu.MemorySpace.VMEM)] * 6,
        out_specs=pl.BlockSpec(memory_space=pltpu.MemorySpace.VMEM),
    )(x, lens, w_gate, b_gate, w_head, b_head)

    out1 = out[:B, :P1]
    out2 = out[:B, P1:P1 + P2]
    return out1, out2


def reference_forward(text_indices, embedding_matrix, params):
    """Pure-JAX f32 reference matching the PyTorch module semantics."""
    x = jnp.take(embedding_matrix, text_indices, axis=0)        # (B, T, E)
    x_len = jnp.sum(text_indices != 0, axis=-1).astype(jnp.int32)
    B, T, E = x.shape
    H = params["w_hh"].shape[0]

    def step(carry, t):
        h, c = carry
        x_t = x[:, t, :]
        gates = x_t @ params["w_ih"] + h @ params["w_hh"] + params["b"]
        i_g = jax.nn.sigmoid(gates[:, 0 * H:1 * H])
        f_g = jax.nn.sigmoid(gates[:, 1 * H:2 * H])
        g_g = jnp.tanh(gates[:, 2 * H:3 * H])
        o_g = jax.nn.sigmoid(gates[:, 3 * H:4 * H])
        c_new = f_g * c + i_g * g_g
        h_new = o_g * jnp.tanh(c_new)
        m = (x_len > t)[:, None]
        h = jnp.where(m, h_new, h)
        c = jnp.where(m, c_new, c)
        return (h, c), None

    h0 = jnp.zeros((B, H), jnp.float32)
    c0 = jnp.zeros((B, H), jnp.float32)
    (h_n, _), _ = jax.lax.scan(step, (h0, c0), jnp.arange(T))
    out1 = h_n @ params["w1"] + params["b1"]
    out2 = h_n @ params["w2"] + params["b2"]
    return out1, out2


if __name__ == "__main__":
    # Small shapes consistent with the module.
    VOCAB, EMBED_DIM, HIDDEN_DIM = 20, 32, 32
    POL1, POL2 = 3, 3
    B, T = 4, 8

    key = jax.random.PRNGKey(0)
    ks = jax.random.split(key, 10)

    embedding_matrix = jax.random.normal(ks[0], (VOCAB, EMBED_DIM), jnp.float32) * 0.1
    embedding_matrix = embedding_matrix.at[0].set(0.0)  # padding idx row
    params = {
        "w_ih": jax.random.normal(ks[1], (EMBED_DIM, 4 * HIDDEN_DIM), jnp.float32) * 0.1,
        "w_hh": jax.random.normal(ks[2], (HIDDEN_DIM, 4 * HIDDEN_DIM), jnp.float32) * 0.1,
        "b": jax.random.normal(ks[3], (1, 4 * HIDDEN_DIM), jnp.float32) * 0.1,
        "w1": jax.random.normal(ks[4], (HIDDEN_DIM, POL1), jnp.float32) * 0.1,
        "b1": jax.random.normal(ks[5], (1, POL1), jnp.float32) * 0.1,
        "w2": jax.random.normal(ks[6], (HIDDEN_DIM, POL2), jnp.float32) * 0.1,
        "b2": jax.random.normal(ks[7], (1, POL2), jnp.float32) * 0.1,
    }

    # text_indices: right-padded with zeros, variable lengths per row.
    lengths = jnp.array([8, 5, 3, 6], dtype=jnp.int32)
    tokens = jax.random.randint(ks[8], (B, T), 1, VOCAB, dtype=jnp.int32)
    pos = jnp.arange(T)[None, :]
    text_indices = jnp.where(pos < lengths[:, None], tokens, 0)

    out1, out2 = lstm_forward(text_indices, embedding_matrix, params)
    out1, out2 = jax.block_until_ready((out1, out2))

    ref1, ref2 = reference_forward(text_indices, embedding_matrix, params)
    # Tolerance loosened vs. the f32 reference because matmuls run in bf16
    # (f32 accumulation); the recurrence state stays f32.
    assert jnp.allclose(out1, ref1, atol=2e-2, rtol=2e-2)
    assert jnp.allclose(out2, ref2, atol=2e-2, rtol=2e-2)

    print("KERNEL_OK")
</pallas_src>

<mosaic_0001>
module attributes {stable_mosaic.version = 11 : i64} {
  func.func @lstm_kernel(%arg0: memref<8x8x128xbf16, #tpu.memory_space<vmem>>, %arg1: memref<8x128xi32, #tpu.memory_space<vmem>>, %arg2: memref<256x512xbf16, #tpu.memory_space<vmem>>, %arg3: memref<1x512xf32, #tpu.memory_space<vmem>>, %arg4: memref<128x128xbf16, #tpu.memory_space<vmem>>, %arg5: memref<1x128xf32, #tpu.memory_space<vmem>>, %arg6: memref<8x128xf32, #tpu.memory_space<vmem>>) attributes {dimension_semantics = [], scalar_prefetch = 0 : i64, scratch_operands = 0 : i64, tpu.core_type = #tpu.core_type<tc>} {
    %c0 = arith.constant 0 : index
    %c0_0 = arith.constant 0 : index
    %0 = vector.load %arg1[%c0, %c0_0] : memref<8x128xi32, #tpu.memory_space<vmem>>, vector<8x128xi32>
    %c0_1 = arith.constant 0 : index
    %c0_2 = arith.constant 0 : index
    %1 = vector.load %arg2[%c0_1, %c0_2] : memref<256x512xbf16, #tpu.memory_space<vmem>>, vector<256x512xbf16>
    %c0_3 = arith.constant 0 : index
    %c0_4 = arith.constant 0 : index
    %2 = vector.load %arg3[%c0_3, %c0_4] : memref<1x512xf32, #tpu.memory_space<vmem>>, vector<1x512xf32>
    %3 = vector.shape_cast %2 : vector<1x512xf32> to vector<1x512xf32>
    %4 = vector.broadcast %3 : vector<1x512xf32> to vector<8x512xf32>
    %cst = arith.constant 0.000000e+00 : f32
    %5 = vector.broadcast %cst : f32 to vector<8x128xf32>
    %cst_5 = arith.constant 0.000000e+00 : f32
    %6 = vector.broadcast %cst_5 : f32 to vector<8x128xf32>
    %c0_i32 = arith.constant 0 : i32
    %7 = arith.index_cast %c0_i32 : i32 to index
    %c0_6 = arith.constant 0 : index
    %c0_7 = arith.constant 0 : index
    %8 = vector.load %arg0[%7, %c0_6, %c0_7] : memref<8x8x128xbf16, #tpu.memory_space<vmem>>, vector<1x8x128xbf16>
    %9 = vector.shape_cast %8 : vector<1x8x128xbf16> to vector<8x128xbf16>
    %10 = arith.truncf %5 : vector<8x128xf32> to vector<8x128xbf16>
    %11 = tpu.concatenate %9, %10 in 1 : vector<8x128xbf16>, vector<8x128xbf16> -> vector<8x256xbf16>
    %cst_8 = arith.constant dense<0.000000e+00> : vector<8x512xf32>
    %12 = tpu.matmul %11, %1, %cst_8 {dimension_numbers = #tpu.dot_dimension_numbers<[1], [0], [0], [1], [0, 0, 1, 1], [], []>} : vector<8x256xbf16>, vector<256x512xbf16>, vector<8x512xf32> -> vector<8x512xf32>
    %13 = arith.addf %12, %4 : vector<8x512xf32>
    %14 = vector.extract_strided_slice %13 {offsets = [0, 0], sizes = [8, 128], strides = [1, 1]} : vector<8x512xf32> to vector<8x128xf32>
    %15 = arith.negf %14 : vector<8x128xf32>
    %16 = math.exp %15 : vector<8x128xf32>
    %cst_9 = arith.constant 1.000000e+00 : f32
    %17 = vector.broadcast %cst_9 : f32 to vector<8x128xf32>
    %18 = arith.addf %17, %16 : vector<8x128xf32>
    %19 = arith.divf %17, %18 : vector<8x128xf32>
    %20 = vector.extract_strided_slice %13 {offsets = [0, 128], sizes = [8, 128], strides = [1, 1]} : vector<8x512xf32> to vector<8x128xf32>
    %21 = arith.negf %20 : vector<8x128xf32>
    %22 = math.exp %21 : vector<8x128xf32>
    %cst_10 = arith.constant 1.000000e+00 : f32
    %23 = vector.broadcast %cst_10 : f32 to vector<8x128xf32>
    %24 = arith.addf %23, %22 : vector<8x128xf32>
    %25 = arith.divf %23, %24 : vector<8x128xf32>
    %26 = vector.extract_strided_slice %13 {offsets = [0, 256], sizes = [8, 128], strides = [1, 1]} : vector<8x512xf32> to vector<8x128xf32>
    %27 = math.tanh %26 : vector<8x128xf32>
    %28 = vector.extract_strided_slice %13 {offsets = [0, 384], sizes = [8, 128], strides = [1, 1]} : vector<8x512xf32> to vector<8x128xf32>
    %29 = arith.negf %28 : vector<8x128xf32>
    %30 = math.exp %29 : vector<8x128xf32>
    %cst_11 = arith.constant 1.000000e+00 : f32
    %31 = vector.broadcast %cst_11 : f32 to vector<8x128xf32>
    %32 = arith.addf %31, %30 : vector<8x128xf32>
    %33 = arith.divf %31, %32 : vector<8x128xf32>
    %34 = arith.mulf %25, %6 : vector<8x128xf32>
    %35 = arith.mulf %19, %27 : vector<8x128xf32>
    %36 = arith.addf %34, %35 : vector<8x128xf32>
    %37 = math.tanh %36 : vector<8x128xf32>
    %38 = arith.mulf %33, %37 : vector<8x128xf32>
    %39 = vector.broadcast %c0_i32 : i32 to vector<8x128xi32>
    %40 = arith.cmpi sgt, %0, %39 : vector<8x128xi32>
    %41 = arith.select %40, %38, %5 : vector<8x128xi1>, vector<8x128xf32>
    %42 = arith.select %40, %36, %6 : vector<8x128xi1>, vector<8x128xf32>
    %c1_i32 = arith.constant 1 : i32
    %43 = arith.index_cast %c1_i32 : i32 to index
    %c0_12 = arith.constant 0 : index
    %c0_13 = arith.constant 0 : index
    %44 = vector.load %arg0[%43, %c0_12, %c0_13] : memref<8x8x128xbf16, #tpu.memory_space<vmem>>, vector<1x8x128xbf16>
    %45 = vector.shape_cast %44 : vector<1x8x128xbf16> to vector<8x128xbf16>
    %46 = arith.truncf %41 : vector<8x128xf32> to vector<8x128xbf16>
    %47 = tpu.concatenate %45, %46 in 1 : vector<8x128xbf16>, vector<8x128xbf16> -> vector<8x256xbf16>
    %cst_14 = arith.constant dense<0.000000e+00> : vector<8x512xf32>
    %48 = tpu.matmul %47, %1, %cst_14 {dimension_numbers = #tpu.dot_dimension_numbers<[1], [0], [0], [1], [0, 0, 1, 1], [], []>} : vector<8x256xbf16>, vector<256x512xbf16>, vector<8x512xf32> -> vector<8x512xf32>
    %49 = arith.addf %48, %4 : vector<8x512xf32>
    %50 = vector.extract_strided_slice %49 {offsets = [0, 0], sizes = [8, 128], strides = [1, 1]} : vector<8x512xf32> to vector<8x128xf32>
    %51 = arith.negf %50 : vector<8x128xf32>
    %52 = math.exp %51 : vector<8x128xf32>
    %cst_15 = arith.constant 1.000000e+00 : f32
    %53 = vector.broadcast %cst_15 : f32 to vector<8x128xf32>
    %54 = arith.addf %53, %52 : vector<8x128xf32>
    %55 = arith.divf %53, %54 : vector<8x128xf32>
    %56 = vector.extract_strided_slice %49 {offsets = [0, 128], sizes = [8, 128], strides = [1, 1]} : vector<8x512xf32> to vector<8x128xf32>
    %57 = arith.negf %56 : vector<8x128xf32>
    %58 = math.exp %57 : vector<8x128xf32>
    %cst_16 = arith.constant 1.000000e+00 : f32
    %59 = vector.broadcast %cst_16 : f32 to vector<8x128xf32>
    %60 = arith.addf %59, %58 : vector<8x128xf32>
    %61 = arith.divf %59, %60 : vector<8x128xf32>
    %62 = vector.extract_strided_slice %49 {offsets = [0, 256], sizes = [8, 128], strides = [1, 1]} : vector<8x512xf32> to vector<8x128xf32>
    %63 = math.tanh %62 : vector<8x128xf32>
    %64 = vector.extract_strided_slice %49 {offsets = [0, 384], sizes = [8, 128], strides = [1, 1]} : vector<8x512xf32> to vector<8x128xf32>
    %65 = arith.negf %64 : vector<8x128xf32>
    %66 = math.exp %65 : vector<8x128xf32>
    %cst_17 = arith.constant 1.000000e+00 : f32
    %67 = vector.broadcast %cst_17 : f32 to vector<8x128xf32>
    %68 = arith.addf %67, %66 : vector<8x128xf32>
    %69 = arith.divf %67, %68 : vector<8x128xf32>
    %70 = arith.mulf %61, %42 : vector<8x128xf32>
    %71 = arith.mulf %55, %63 : vector<8x128xf32>
    %72 = arith.addf %70, %71 : vector<8x128xf32>
    %73 = math.tanh %72 : vector<8x128xf32>
    %74 = arith.mulf %69, %73 : vector<8x128xf32>
    %75 = vector.broadcast %c1_i32 : i32 to vector<8x128xi32>
    %76 = arith.cmpi sgt, %0, %75 : vector<8x128xi32>
    %77 = arith.select %76, %74, %41 : vector<8x128xi1>, vector<8x128xf32>
    %78 = arith.select %76, %72, %42 : vector<8x128xi1>, vector<8x128xf32>
    %c2_i32 = arith.constant 2 : i32
    %79 = arith.index_cast %c2_i32 : i32 to index
    %c0_18 = arith.constant 0 : index
    %c0_19 = arith.constant 0 : index
    %80 = vector.load %arg0[%79, %c0_18, %c0_19] : memref<8x8x128xbf16, #tpu.memory_space<vmem>>, vector<1x8x128xbf16>
    %81 = vector.shape_cast %80 : vector<1x8x128xbf16> to vector<8x128xbf16>
    %82 = arith.truncf %77 : vector<8x128xf32> to vector<8x128xbf16>
    %83 = tpu.concatenate %81, %82 in 1 : vector<8x128xbf16>, vector<8x128xbf16> -> vector<8x256xbf16>
    %cst_20 = arith.constant dense<0.000000e+00> : vector<8x512xf32>
    %84 = tpu.matmul %83, %1, %cst_20 {dimension_numbers = #tpu.dot_dimension_numbers<[1], [0], [0], [1], [0, 0, 1, 1], [], []>} : vector<8x256xbf16>, vector<256x512xbf16>, vector<8x512xf32> -> vector<8x512xf32>
    %85 = arith.addf %84, %4 : vector<8x512xf32>
    %86 = vector.extract_strided_slice %85 {offsets = [0, 0], sizes = [8, 128], strides = [1, 1]} : vector<8x512xf32> to vector<8x128xf32>
    %87 = arith.negf %86 : vector<8x128xf32>
    %88 = math.exp %87 : vector<8x128xf32>
    %cst_21 = arith.constant 1.000000e+00 : f32
    %89 = vector.broadcast %cst_21 : f32 to vector<8x128xf32>
    %90 = arith.addf %89, %88 : vector<8x128xf32>
    %91 = arith.divf %89, %90 : vector<8x128xf32>
    %92 = vector.extract_strided_slice %85 {offsets = [0, 128], sizes = [8, 128], strides = [1, 1]} : vector<8x512xf32> to vector<8x128xf32>
    %93 = arith.negf %92 : vector<8x128xf32>
    %94 = math.exp %93 : vector<8x128xf32>
    %cst_22 = arith.constant 1.000000e+00 : f32
    %95 = vector.broadcast %cst_22 : f32 to vector<8x128xf32>
    %96 = arith.addf %95, %94 : vector<8x128xf32>
    %97 = arith.divf %95, %96 : vector<8x128xf32>
    %98 = vector.extract_strided_slice %85 {offsets = [0, 256], sizes = [8, 128], strides = [1, 1]} : vector<8x512xf32> to vector<8x128xf32>
    %99 = math.tanh %98 : vector<8x128xf32>
    %100 = vector.extract_strided_slice %85 {offsets = [0, 384], sizes = [8, 128], strides = [1, 1]} : vector<8x512xf32> to vector<8x128xf32>
    %101 = arith.negf %100 : vector<8x128xf32>
    %102 = math.exp %101 : vector<8x128xf32>
    %cst_23 = arith.constant 1.000000e+00 : f32
    %103 = vector.broadcast %cst_23 : f32 to vector<8x128xf32>
    %104 = arith.addf %103, %102 : vector<8x128xf32>
    %105 = arith.divf %103, %104 : vector<8x128xf32>
    %106 = arith.mulf %97, %78 : vector<8x128xf32>
    %107 = arith.mulf %91, %99 : vector<8x128xf32>
    %108 = arith.addf %106, %107 : vector<8x128xf32>
    %109 = math.tanh %108 : vector<8x128xf32>
    %110 = arith.mulf %105, %109 : vector<8x128xf32>
    %111 = vector.broadcast %c2_i32 : i32 to vector<8x128xi32>
    %112 = arith.cmpi sgt, %0, %111 : vector<8x128xi32>
    %113 = arith.select %112, %110, %77 : vector<8x128xi1>, vector<8x128xf32>
    %114 = arith.select %112, %108, %78 : vector<8x128xi1>, vector<8x128xf32>
    %c3_i32 = arith.constant 3 : i32
    %115 = arith.index_cast %c3_i32 : i32 to index
    %c0_24 = arith.constant 0 : index
    %c0_25 = arith.constant 0 : index
    %116 = vector.load %arg0[%115, %c0_24, %c0_25] : memref<8x8x128xbf16, #tpu.memory_space<vmem>>, vector<1x8x128xbf16>
    %117 = vector.shape_cast %116 : vector<1x8x128xbf16> to vector<8x128xbf16>
    %118 = arith.truncf %113 : vector<8x128xf32> to vector<8x128xbf16>
    %119 = tpu.concatenate %117, %118 in 1 : vector<8x128xbf16>, vector<8x128xbf16> -> vector<8x256xbf16>
    %cst_26 = arith.constant dense<0.000000e+00> : vector<8x512xf32>
    %120 = tpu.matmul %119, %1, %cst_26 {dimension_numbers = #tpu.dot_dimension_numbers<[1], [0], [0], [1], [0, 0, 1, 1], [], []>} : vector<8x256xbf16>, vector<256x512xbf16>, vector<8x512xf32> -> vector<8x512xf32>
    %121 = arith.addf %120, %4 : vector<8x512xf32>
    %122 = vector.extract_strided_slice %121 {offsets = [0, 0], sizes = [8, 128], strides = [1, 1]} : vector<8x512xf32> to vector<8x128xf32>
    %123 = arith.negf %122 : vector<8x128xf32>
    %124 = math.exp %123 : vector<8x128xf32>
    %cst_27 = arith.constant 1.000000e+00 : f32
    %125 = vector.broadcast %cst_27 : f32 to vector<8x128xf32>
    %126 = arith.addf %125, %124 : vector<8x128xf32>
    %127 = arith.divf %125, %126 : vector<8x128xf32>
    %128 = vector.extract_strided_slice %121 {offsets = [0, 128], sizes = [8, 128], strides = [1, 1]} : vector<8x512xf32> to vector<8x128xf32>
    %129 = arith.negf %128 : vector<8x128xf32>
    %130 = math.exp %129 : vector<8x128xf32>
    %cst_28 = arith.constant 1.000000e+00 : f32
    %131 = vector.broadcast %cst_28 : f32 to vector<8x128xf32>
    %132 = arith.addf %131, %130 : vector<8x128xf32>
    %133 = arith.divf %131, %132 : vector<8x128xf32>
    %134 = vector.extract_strided_slice %121 {offsets = [0, 256], sizes = [8, 128], strides = [1, 1]} : vector<8x512xf32> to vector<8x128xf32>
    %135 = math.tanh %134 : vector<8x128xf32>
    %136 = vector.extract_strided_slice %121 {offsets = [0, 384], sizes = [8, 128], strides = [1, 1]} : vector<8x512xf32> to vector<8x128xf32>
    %137 = arith.negf %136 : vector<8x128xf32>
    %138 = math.exp %137 : vector<8x128xf32>
    %cst_29 = arith.constant 1.000000e+00 : f32
    %139 = vector.broadcast %cst_29 : f32 to vector<8x128xf32>
    %140 = arith.addf %139, %138 : vector<8x128xf32>
    %141 = arith.divf %139, %140 : vector<8x128xf32>
    %142 = arith.mulf %133, %114 : vector<8x128xf32>
    %143 = arith.mulf %127, %135 : vector<8x128xf32>
    %144 = arith.addf %142, %143 : vector<8x128xf32>
    %145 = math.tanh %144 : vector<8x128xf32>
    %146 = arith.mulf %141, %145 : vector<8x128xf32>
    %147 = vector.broadcast %c3_i32 : i32 to vector<8x128xi32>
    %148 = arith.cmpi sgt, %0, %147 : vector<8x128xi32>
    %149 = arith.select %148, %146, %113 : vector<8x128xi1>, vector<8x128xf32>
    %150 = arith.select %148, %144, %114 : vector<8x128xi1>, vector<8x128xf32>
    %c4_i32 = arith.constant 4 : i32
    %151 = arith.index_cast %c4_i32 : i32 to index
    %c0_30 = arith.constant 0 : index
    %c0_31 = arith.constant 0 : index
    %152 = vector.load %arg0[%151, %c0_30, %c0_31] : memref<8x8x128xbf16, #tpu.memory_space<vmem>>, vector<1x8x128xbf16>
    %153 = vector.shape_cast %152 : vector<1x8x128xbf16> to vector<8x128xbf16>
    %154 = arith.truncf %149 : vector<8x128xf32> to vector<8x128xbf16>
    %155 = tpu.concatenate %153, %154 in 1 : vector<8x128xbf16>, vector<8x128xbf16> -> vector<8x256xbf16>
    %cst_32 = arith.constant dense<0.000000e+00> : vector<8x512xf32>
    %156 = tpu.matmul %155, %1, %cst_32 {dimension_numbers = #tpu.dot_dimension_numbers<[1], [0], [0], [1], [0, 0, 1, 1], [], []>} : vector<8x256xbf16>, vector<256x512xbf16>, vector<8x512xf32> -> vector<8x512xf32>
    %157 = arith.addf %156, %4 : vector<8x512xf32>
    %158 = vector.extract_strided_slice %157 {offsets = [0, 0], sizes = [8, 128], strides = [1, 1]} : vector<8x512xf32> to vector<8x128xf32>
    %159 = arith.negf %158 : vector<8x128xf32>
    %160 = math.exp %159 : vector<8x128xf32>
    %cst_33 = arith.constant 1.000000e+00 : f32
    %161 = vector.broadcast %cst_33 : f32 to vector<8x128xf32>
    %162 = arith.addf %161, %160 : vector<8x128xf32>
    %163 = arith.divf %161, %162 : vector<8x128xf32>
    %164 = vector.extract_strided_slice %157 {offsets = [0, 128], sizes = [8, 128], strides = [1, 1]} : vector<8x512xf32> to vector<8x128xf32>
    %165 = arith.negf %164 : vector<8x128xf32>
    %166 = math.exp %165 : vector<8x128xf32>
    %cst_34 = arith.constant 1.000000e+00 : f32
    %167 = vector.broadcast %cst_34 : f32 to vector<8x128xf32>
    %168 = arith.addf %167, %166 : vector<8x128xf32>
    %169 = arith.divf %167, %168 : vector<8x128xf32>
    %170 = vector.extract_strided_slice %157 {offsets = [0, 256], sizes = [8, 128], strides = [1, 1]} : vector<8x512xf32> to vector<8x128xf32>
    %171 = math.tanh %170 : vector<8x128xf32>
    %172 = vector.extract_strided_slice %157 {offsets = [0, 384], sizes = [8, 128], strides = [1, 1]} : vector<8x512xf32> to vector<8x128xf32>
    %173 = arith.negf %172 : vector<8x128xf32>
    %174 = math.exp %173 : vector<8x128xf32>
    %cst_35 = arith.constant 1.000000e+00 : f32
    %175 = vector.broadcast %cst_35 : f32 to vector<8x128xf32>
    %176 = arith.addf %175, %174 : vector<8x128xf32>
    %177 = arith.divf %175, %176 : vector<8x128xf32>
    %178 = arith.mulf %169, %150 : vector<8x128xf32>
    %179 = arith.mulf %163, %171 : vector<8x128xf32>
    %180 = arith.addf %178, %179 : vector<8x128xf32>
    %181 = math.tanh %180 : vector<8x128xf32>
    %182 = arith.mulf %177, %181 : vector<8x128xf32>
    %183 = vector.broadcast %c4_i32 : i32 to vector<8x128xi32>
    %184 = arith.cmpi sgt, %0, %183 : vector<8x128xi32>
    %185 = arith.select %184, %182, %149 : vector<8x128xi1>, vector<8x128xf32>
    %186 = arith.select %184, %180, %150 : vector<8x128xi1>, vector<8x128xf32>
    %c5_i32 = arith.constant 5 : i32
    %187 = arith.index_cast %c5_i32 : i32 to index
    %c0_36 = arith.constant 0 : index
    %c0_37 = arith.constant 0 : index
    %188 = vector.load %arg0[%187, %c0_36, %c0_37] : memref<8x8x128xbf16, #tpu.memory_space<vmem>>, vector<1x8x128xbf16>
    %189 = vector.shape_cast %188 : vector<1x8x128xbf16> to vector<8x128xbf16>
    %190 = arith.truncf %185 : vector<8x128xf32> to vector<8x128xbf16>
    %191 = tpu.concatenate %189, %190 in 1 : vector<8x128xbf16>, vector<8x128xbf16> -> vector<8x256xbf16>
    %cst_38 = arith.constant dense<0.000000e+00> : vector<8x512xf32>
    %192 = tpu.matmul %191, %1, %cst_38 {dimension_numbers = #tpu.dot_dimension_numbers<[1], [0], [0], [1], [0, 0, 1, 1], [], []>} : vector<8x256xbf16>, vector<256x512xbf16>, vector<8x512xf32> -> vector<8x512xf32>
    %193 = arith.addf %192, %4 : vector<8x512xf32>
    %194 = vector.extract_strided_slice %193 {offsets = [0, 0], sizes = [8, 128], strides = [1, 1]} : vector<8x512xf32> to vector<8x128xf32>
    %195 = arith.negf %194 : vector<8x128xf32>
    %196 = math.exp %195 : vector<8x128xf32>
    %cst_39 = arith.constant 1.000000e+00 : f32
    %197 = vector.broadcast %cst_39 : f32 to vector<8x128xf32>
    %198 = arith.addf %197, %196 : vector<8x128xf32>
    %199 = arith.divf %197, %198 : vector<8x128xf32>
    %200 = vector.extract_strided_slice %193 {offsets = [0, 128], sizes = [8, 128], strides = [1, 1]} : vector<8x512xf32> to vector<8x128xf32>
    %201 = arith.negf %200 : vector<8x128xf32>
    %202 = math.exp %201 : vector<8x128xf32>
    %cst_40 = arith.constant 1.000000e+00 : f32
    %203 = vector.broadcast %cst_40 : f32 to vector<8x128xf32>
    %204 = arith.addf %203, %202 : vector<8x128xf32>
    %205 = arith.divf %203, %204 : vector<8x128xf32>
    %206 = vector.extract_strided_slice %193 {offsets = [0, 256], sizes = [8, 128], strides = [1, 1]} : vector<8x512xf32> to vector<8x128xf32>
    %207 = math.tanh %206 : vector<8x128xf32>
    %208 = vector.extract_strided_slice %193 {offsets = [0, 384], sizes = [8, 128], strides = [1, 1]} : vector<8x512xf32> to vector<8x128xf32>
    %209 = arith.negf %208 : vector<8x128xf32>
    %210 = math.exp %209 : vector<8x128xf32>
    %cst_41 = arith.constant 1.000000e+00 : f32
    %211 = vector.broadcast %cst_41 : f32 to vector<8x128xf32>
    %212 = arith.addf %211, %210 : vector<8x128xf32>
    %213 = arith.divf %211, %212 : vector<8x128xf32>
    %214 = arith.mulf %205, %186 : vector<8x128xf32>
    %215 = arith.mulf %199, %207 : vector<8x128xf32>
    %216 = arith.addf %214, %215 : vector<8x128xf32>
    %217 = math.tanh %216 : vector<8x128xf32>
    %218 = arith.mulf %213, %217 : vector<8x128xf32>
    %219 = vector.broadcast %c5_i32 : i32 to vector<8x128xi32>
    %220 = arith.cmpi sgt, %0, %219 : vector<8x128xi32>
    %221 = arith.select %220, %218, %185 : vector<8x128xi1>, vector<8x128xf32>
    %222 = arith.select %220, %216, %186 : vector<8x128xi1>, vector<8x128xf32>
    %c6_i32 = arith.constant 6 : i32
    %223 = arith.index_cast %c6_i32 : i32 to index
    %c0_42 = arith.constant 0 : index
    %c0_43 = arith.constant 0 : index
    %224 = vector.load %arg0[%223, %c0_42, %c0_43] : memref<8x8x128xbf16, #tpu.memory_space<vmem>>, vector<1x8x128xbf16>
    %225 = vector.shape_cast %224 : vector<1x8x128xbf16> to vector<8x128xbf16>
    %226 = arith.truncf %221 : vector<8x128xf32> to vector<8x128xbf16>
    %227 = tpu.concatenate %225, %226 in 1 : vector<8x128xbf16>, vector<8x128xbf16> -> vector<8x256xbf16>
    %cst_44 = arith.constant dense<0.000000e+00> : vector<8x512xf32>
    %228 = tpu.matmul %227, %1, %cst_44 {dimension_numbers = #tpu.dot_dimension_numbers<[1], [0], [0], [1], [0, 0, 1, 1], [], []>} : vector<8x256xbf16>, vector<256x512xbf16>, vector<8x512xf32> -> vector<8x512xf32>
    %229 = arith.addf %228, %4 : vector<8x512xf32>
    %230 = vector.extract_strided_slice %229 {offsets = [0, 0], sizes = [8, 128], strides = [1, 1]} : vector<8x512xf32> to vector<8x128xf32>
    %231 = arith.negf %230 : vector<8x128xf32>
    %232 = math.exp %231 : vector<8x128xf32>
    %cst_45 = arith.constant 1.000000e+00 : f32
    %233 = vector.broadcast %cst_45 : f32 to vector<8x128xf32>
    %234 = arith.addf %233, %232 : vector<8x128xf32>
    %235 = arith.divf %233, %234 : vector<8x128xf32>
    %236 = vector.extract_strided_slice %229 {offsets = [0, 128], sizes = [8, 128], strides = [1, 1]} : vector<8x512xf32> to vector<8x128xf32>
    %237 = arith.negf %236 : vector<8x128xf32>
    %238 = math.exp %237 : vector<8x128xf32>
    %cst_46 = arith.constant 1.000000e+00 : f32
    %239 = vector.broadcast %cst_46 : f32 to vector<8x128xf32>
    %240 = arith.addf %239, %238 : vector<8x128xf32>
    %241 = arith.divf %239, %240 : vector<8x128xf32>
    %242 = vector.extract_strided_slice %229 {offsets = [0, 256], sizes = [8, 128], strides = [1, 1]} : vector<8x512xf32> to vector<8x128xf32>
    %243 = math.tanh %242 : vector<8x128xf32>
    %244 = vector.extract_strided_slice %229 {offsets = [0, 384], sizes = [8, 128], strides = [1, 1]} : vector<8x512xf32> to vector<8x128xf32>
    %245 = arith.negf %244 : vector<8x128xf32>
    %246 = math.exp %245 : vector<8x128xf32>
    %cst_47 = arith.constant 1.000000e+00 : f32
    %247 = vector.broadcast %cst_47 : f32 to vector<8x128xf32>
    %248 = arith.addf %247, %246 : vector<8x128xf32>
    %249 = arith.divf %247, %248 : vector<8x128xf32>
    %250 = arith.mulf %241, %222 : vector<8x128xf32>
    %251 = arith.mulf %235, %243 : vector<8x128xf32>
    %252 = arith.addf %250, %251 : vector<8x128xf32>
    %253 = math.tanh %252 : vector<8x128xf32>
    %254 = arith.mulf %249, %253 : vector<8x128xf32>
    %255 = vector.broadcast %c6_i32 : i32 to vector<8x128xi32>
    %256 = arith.cmpi sgt, %0, %255 : vector<8x128xi32>
    %257 = arith.select %256, %254, %221 : vector<8x128xi1>, vector<8x128xf32>
    %258 = arith.select %256, %252, %222 : vector<8x128xi1>, vector<8x128xf32>
    %c7_i32 = arith.constant 7 : i32
    %259 = arith.index_cast %c7_i32 : i32 to index
    %c0_48 = arith.constant 0 : index
    %c0_49 = arith.constant 0 : index
    %260 = vector.load %arg0[%259, %c0_48, %c0_49] : memref<8x8x128xbf16, #tpu.memory_space<vmem>>, vector<1x8x128xbf16>
    %261 = vector.shape_cast %260 : vector<1x8x128xbf16> to vector<8x128xbf16>
    %262 = arith.truncf %257 : vector<8x128xf32> to vector<8x128xbf16>
    %263 = tpu.concatenate %261, %262 in 1 : vector<8x128xbf16>, vector<8x128xbf16> -> vector<8x256xbf16>
    %cst_50 = arith.constant dense<0.000000e+00> : vector<8x512xf32>
    %264 = tpu.matmul %263, %1, %cst_50 {dimension_numbers = #tpu.dot_dimension_numbers<[1], [0], [0], [1], [0, 0, 1, 1], [], []>} : vector<8x256xbf16>, vector<256x512xbf16>, vector<8x512xf32> -> vector<8x512xf32>
    %265 = arith.addf %264, %4 : vector<8x512xf32>
    %266 = vector.extract_strided_slice %265 {offsets = [0, 0], sizes = [8, 128], strides = [1, 1]} : vector<8x512xf32> to vector<8x128xf32>
    %267 = arith.negf %266 : vector<8x128xf32>
    %268 = math.exp %267 : vector<8x128xf32>
    %cst_51 = arith.constant 1.000000e+00 : f32
    %269 = vector.broadcast %cst_51 : f32 to vector<8x128xf32>
    %270 = arith.addf %269, %268 : vector<8x128xf32>
    %271 = arith.divf %269, %270 : vector<8x128xf32>
    %272 = vector.extract_strided_slice %265 {offsets = [0, 128], sizes = [8, 128], strides = [1, 1]} : vector<8x512xf32> to vector<8x128xf32>
    %273 = arith.negf %272 : vector<8x128xf32>
    %274 = math.exp %273 : vector<8x128xf32>
    %cst_52 = arith.constant 1.000000e+00 : f32
    %275 = vector.broadcast %cst_52 : f32 to vector<8x128xf32>
    %276 = arith.addf %275, %274 : vector<8x128xf32>
    %277 = arith.divf %275, %276 : vector<8x128xf32>
    %278 = vector.extract_strided_slice %265 {offsets = [0, 256], sizes = [8, 128], strides = [1, 1]} : vector<8x512xf32> to vector<8x128xf32>
    %279 = math.tanh %278 : vector<8x128xf32>
    %280 = vector.extract_strided_slice %265 {offsets = [0, 384], sizes = [8, 128], strides = [1, 1]} : vector<8x512xf32> to vector<8x128xf32>
    %281 = arith.negf %280 : vector<8x128xf32>
    %282 = math.exp %281 : vector<8x128xf32>
    %cst_53 = arith.constant 1.000000e+00 : f32
    %283 = vector.broadcast %cst_53 : f32 to vector<8x128xf32>
    %284 = arith.addf %283, %282 : vector<8x128xf32>
    %285 = arith.divf %283, %284 : vector<8x128xf32>
    %286 = arith.mulf %277, %258 : vector<8x128xf32>
    %287 = arith.mulf %271, %279 : vector<8x128xf32>
    %288 = arith.addf %286, %287 : vector<8x128xf32>
    %289 = math.tanh %288 : vector<8x128xf32>
    %290 = arith.mulf %285, %289 : vector<8x128xf32>
    %291 = vector.broadcast %c7_i32 : i32 to vector<8x128xi32>
    %292 = arith.cmpi sgt, %0, %291 : vector<8x128xi32>
    %293 = arith.select %292, %290, %257 : vector<8x128xi1>, vector<8x128xf32>
    %294 = arith.select %292, %288, %258 : vector<8x128xi1>, vector<8x128xf32>
    %c8_i32 = arith.constant 8 : i32
    %295 = arith.truncf %293 : vector<8x128xf32> to vector<8x128xbf16>
    %c0_54 = arith.constant 0 : index
    %c0_55 = arith.constant 0 : index
    %296 = vector.load %arg4[%c0_54, %c0_55] : memref<128x128xbf16, #tpu.memory_space<vmem>>, vector<128x128xbf16>
    %cst_56 = arith.constant dense<0.000000e+00> : vector<8x128xf32>
    %297 = tpu.matmul %295, %296, %cst_56 {dimension_numbers = #tpu.dot_dimension_numbers<[1], [0], [0], [1], [0, 0, 1, 1], [], []>} : vector<8x128xbf16>, vector<128x128xbf16>, vector<8x128xf32> -> vector<8x128xf32>
    %c0_57 = arith.constant 0 : index
    %c0_58 = arith.constant 0 : index
    %298 = vector.load %arg5[%c0_57, %c0_58] : memref<1x128xf32, #tpu.memory_space<vmem>>, vector<1x128xf32>
    %299 = vector.broadcast %298 : vector<1x128xf32> to vector<8x128xf32>
    %300 = arith.addf %297, %299 : vector<8x128xf32>
    %c0_59 = arith.constant 0 : index
    %c0_60 = arith.constant 0 : index
    %301 = vector.load %arg6[%c0_59, %c0_60] : memref<8x128xf32, #tpu.memory_space<vmem>>, vector<8x128xf32>
    tpu.vector_store %arg6[%c0_59, %c0_60], %300 {strides = array<i32>} : memref<8x128xf32, #tpu.memory_space<vmem>>, vector<8x128xf32>,
    return
  }
}

</mosaic_0001>

<llo_original>
// kernel: tpu_custom_call.1
$region0: #{tpu_custom_call.1}
  #allocation0 [shape = 'u32[]', space=smem, size = 0x4, offset = 0x4, fixed_abs, tag = 'smem constant byte address 0x4 - core index']
  #allocation1 [shape = 'u32[144,128]{1,0:T(1,128)}', space=vmem, size = 0x12000, scoped, tag = 'internal scratch']
  %s0 = inlined_call_operand.hbm [shape: bf16[8,8,128], index: 0, kind: input, shape index: {}]
  %s1 = inlined_call_operand.hbm [shape: s32[8,128], index: 1, kind: input, shape index: {}]
  %s2 = inlined_call_operand.hbm [shape: bf16[256,512], index: 2, kind: input, shape index: {}]
  %s3 = inlined_call_operand.vmem [shape: f32[1,512], index: 3, kind: input, shape index: {}]
  %s4 = inlined_call_operand.hbm [shape: bf16[128,128], index: 4, kind: input, shape index: {}]
  %s5 = inlined_call_operand.vmem [shape: f32[1,128], index: 5, kind: input, shape index: {}]
  %s6 = inlined_call_operand.hbm [shape: f32[8,128], index: 6, kind: output, shape index: {}]
  %s7 = sld [smem:[#allocation0]]
  $region50: #{tpu_custom_call.1} parent=0
    _
  %s9 = ssub.s32 1, %s7
  %s10 = scalar_select 0, %s9, %s7
  $region1: #{tpu_custom_call.1} parent=0
    #allocation2 [shape = 'u8[16384]{0}', space=vmem, size = 0x4000, scoped, tag = 'input window, operand 0, single buffered']
    #allocation3 [shape = 's32[1]{0}', space=sflag, size = 0x4, scoped, tag = 'scoped memory for tpu_custom_call.1']
    #allocation4 [shape = 's32[1]{0}', space=sflag, size = 0x4, scoped, tag = 'scoped memory for tpu_custom_call.1']
    #allocation5 [shape = 'u8[4096]{0}', space=vmem, size = 0x1000, scoped, tag = 'input window, operand 1, single buffered']
    #allocation6 [shape = 's32[1]{0}', space=sflag, size = 0x4, scoped, tag = 'scoped memory for tpu_custom_call.1']
    #allocation7 [shape = 'u8[262144]{0}', space=vmem, size = 0x40000, scoped, tag = 'input window, operand 2, single buffered']
    #allocation8 [shape = 'u8[32768]{0}', space=vmem, size = 0x8000, scoped, tag = 'input window, operand 4, single buffered']
    #allocation9 [shape = 's32[1]{0}', space=sflag, size = 0x4, scoped, tag = 'scoped memory for tpu_custom_call.1']
    #allocation10 [shape = 'u8[4096]{0}', space=vmem, size = 0x1000, scoped, tag = 'output window, operand 0, single buffered']
    %11 = vsyncpa [#allocation3], 0
    %12 = vsyncpa [#allocation6], 0
    %13 = vsyncpa [#allocation9], 0
    %14 = vsyncpa [#allocation4], 0
    // Predicated region
    $region2: #{tpu_custom_call.1} parent=1 // pred_check
      _
    $region3: #{tpu_custom_call.1} parent=1 // pred_check_branch
      %16 = sbr.rel (0) target = $region5
    $region4: #{tpu_custom_call.1} parent=1 // pred_region
      %s18 = ssub.s32 512, 512
      %19 = vsyncadd [#allocation3], %s18
      %s20 = sshll.u32 [#allocation2], 4
      %s21 = int_to_ptr.vmem [resolvable:$true] %s20
      %26 = dma.hbm_to_vmem [thread:$0]  %s0, 512, %s21, [#allocation3], 64, 64, 4
    $region5: #{tpu_custom_call.1} parent=1 // pred_fallthru
      _
    // Predicated region
    $region6: #{tpu_custom_call.1} parent=1 // pred_check
      _
    $region7: #{tpu_custom_call.1} parent=1 // pred_check_branch
      %28 = sbr.rel (0) target = $region9
    $region8: #{tpu_custom_call.1} parent=1 // pred_region
      %s30 = ssub.s32 128, 128
      %31 = vsyncadd [#allocation6], %s30
      %s33 = sshll.u32 [#allocation5], 4
      %s34 = int_to_ptr.vmem [resolvable:$true] %s33
      %36 = dma.hbm_to_vmem [thread:$0]  %s1, 128, %s34, [#allocation6]
    $region9: #{tpu_custom_call.1} parent=1 // pred_fallthru
      _
    // Predicated region
    $region10: #{tpu_custom_call.1} parent=1 // pred_check
      _
    $region11: #{tpu_custom_call.1} parent=1 // pred_check_branch
      %38 = sbr.rel (0) target = $region13
    $region12: #{tpu_custom_call.1} parent=1 // pred_region
      %s40 = ssub.s32 8192, 8192
      %41 = vsyncadd [#allocation6], %s40
      %s42 = sshll.u32 [#allocation7], 4
      %s43 = int_to_ptr.vmem [resolvable:$true] %s42
      %48 = dma.hbm_to_vmem [thread:$0]  %s2, 8192, %s43, [#allocation6], 256, 256, 16
    $region13: #{tpu_custom_call.1} parent=1 // pred_fallthru
      _
    // Predicated region
    $region14: #{tpu_custom_call.1} parent=1 // pred_check
      _
    $region15: #{tpu_custom_call.1} parent=1 // pred_check_branch
      %50 = sbr.rel (0) target = $region17
    $region16: #{tpu_custom_call.1} parent=1 // pred_region
      _
    $region17: #{tpu_custom_call.1} parent=1 // pred_fallthru
      _
    // Predicated region
    $region18: #{tpu_custom_call.1} parent=1 // pred_check
      _
    $region19: #{tpu_custom_call.1} parent=1 // pred_check_branch
      %52 = sbr.rel (0) target = $region21
    $region20: #{tpu_custom_call.1} parent=1 // pred_region
      %s54 = ssub.s32 1024, 1024
      %55 = vsyncadd [#allocation9], %s54
      %s56 = sshll.u32 [#allocation8], 4
      %s57 = int_to_ptr.vmem [resolvable:$true] %s56
      %62 = dma.hbm_to_vmem [thread:$0]  %s4, 1024, %s57, [#allocation9], 64, 64, 4
    $region21: #{tpu_custom_call.1} parent=1 // pred_fallthru
      _
    // Predicated region
    $region22: #{tpu_custom_call.1} parent=1 // pred_check
      _
    $region23: #{tpu_custom_call.1} parent=1 // pred_check_branch
      %64 = sbr.rel (0) target = $region25
    $region24: #{tpu_custom_call.1} parent=1 // pred_region
      _
    $region25: #{tpu_custom_call.1} parent=1 // pred_fallthru
      _
    // Predicated region
    $region26: #{tpu_custom_call.1} parent=1 // pred_check
      _
    $region27: #{tpu_custom_call.1} parent=1 // pred_check_branch
      %66 = sbr.rel (0) target = $region29
    $region28: #{tpu_custom_call.1} parent=1 // pred_region
      %67 = dma.done [#allocation3], 512
    $region29: #{tpu_custom_call.1} parent=1 // pred_fallthru
      _
    // Predicated region
    $region30: #{tpu_custom_call.1} parent=1 // pred_check
      _
    $region31: #{tpu_custom_call.1} parent=1 // pred_check_branch
      %69 = sbr.rel (0) target = $region33
    $region32: #{tpu_custom_call.1} parent=1 // pred_region
      %70 = dma.done [#allocation6], 128
    $region33: #{tpu_custom_call.1} parent=1 // pred_fallthru
      _
    // Predicated region
    $region34: #{tpu_custom_call.1} parent=1 // pred_check
      _
    $region35: #{tpu_custom_call.1} parent=1 // pred_check_branch
      %72 = sbr.rel (0) target = $region37
    $region36: #{tpu_custom_call.1} parent=1 // pred_region
      %73 = dma.done [#allocation6], 8192
    $region37: #{tpu_custom_call.1} parent=1 // pred_fallthru
      _
    // Predicated region
    $region38: #{tpu_custom_call.1} parent=1 // pred_check
      _
    $region39: #{tpu_custom_call.1} parent=1 // pred_check_branch
      %75 = sbr.rel (0) target = $region41
    $region40: #{tpu_custom_call.1} parent=1 // pred_region
      %76 = dma.done [#allocation9], 1024
    $region41: #{tpu_custom_call.1} parent=1 // pred_fallthru
      _
    %v78 = vld [vmem:[#allocation5] sm:$0xff]
    %v79 = vld [vmem:[#allocation7] sm:$0xff]
    %v80 = vld [vmem:[#allocation7 + $0x8] sm:$0xff]
    %v81 = vld [vmem:[#allocation7 + $0x10] sm:$0xff]
    %v82 = vld [vmem:[#allocation7 + $0x18] sm:$0xff]
    %v83 = vld [vmem:[#allocation7 + $0x20] sm:$0xff]
    %v84 = vld [vmem:[#allocation7 + $0x28] sm:$0xff]
    %v85 = vld [vmem:[#allocation7 + $0x30] sm:$0xff]
    %v86 = vld [vmem:[#allocation7 + $0x38] sm:$0xff]
    %v87 = vld [vmem:[#allocation7 + $0x40] sm:$0xff]
    %v88 = vld [vmem:[#allocation7 + $0x48] sm:$0xff]
    %v89 = vld [vmem:[#allocation7 + $0x50] sm:$0xff]
    %v90 = vld [vmem:[#allocation7 + $0x58] sm:$0xff]
    %v91 = vld [vmem:[#allocation7 + $0x60] sm:$0xff]
    %v92 = vld [vmem:[#allocation7 + $0x68] sm:$0xff]
    %v93 = vld [vmem:[#allocation7 + $0x70] sm:$0xff]
    %v94 = vld [vmem:[#allocation7 + $0x78] sm:$0xff]
    %v95 = vld [vmem:[#allocation7 + $0x80] sm:$0xff]
    %v96 = vld [vmem:[#allocation7 + $0x88] sm:$0xff]
    %v97 = vld [vmem:[#allocation7 + $0x90] sm:$0xff]
    %v98 = vld [vmem:[#allocation7 + $0x98] sm:$0xff]
    %v99 = vld [vmem:[#allocation7 + $0xa0] sm:$0xff]
    %v100 = vld [vmem:[#allocation7 + $0xa8] sm:$0xff]
    %v101 = vld [vmem:[#allocation7 + $0xb0] sm:$0xff]
    %v102 = vld [vmem:[#allocation7 + $0xb8] sm:$0xff]
    %v103 = vld [vmem:[#allocation7 + $0xc0] sm:$0xff]
    %v104 = vld [vmem:[#allocation7 + $0xc8] sm:$0xff]
    %v105 = vld [vmem:[#allocation7 + $0xd0] sm:$0xff]
    %v106 = vld [vmem:[#allocation7 + $0xd8] sm:$0xff]
    %v107 = vld [vmem:[#allocation7 + $0xe0] sm:$0xff]
    %v108 = vld [vmem:[#allocation7 + $0xe8] sm:$0xff]
    %v109 = vld [vmem:[#allocation7 + $0xf0] sm:$0xff]
    %v110 = vld [vmem:[#allocation7 + $0xf8] sm:$0xff]
    %v111 = vld [vmem:[#allocation7 + $0x100] sm:$0xff]
    %v112 = vld [vmem:[#allocation7 + $0x108] sm:$0xff]
    %v113 = vld [vmem:[#allocation7 + $0x110] sm:$0xff]
    %v114 = vld [vmem:[#allocation7 + $0x118] sm:$0xff]
    %v115 = vld [vmem:[#allocation7 + $0x120] sm:$0xff]
    %v116 = vld [vmem:[#allocation7 + $0x128] sm:$0xff]
    %v117 = vld [vmem:[#allocation7 + $0x130] sm:$0xff]
    %v118 = vld [vmem:[#allocation7 + $0x138] sm:$0xff]
    %v119 = vld [vmem:[#allocation7 + $0x140] sm:$0xff]
    %v120 = vld [vmem:[#allocation7 + $0x148] sm:$0xff]
    %v121 = vld [vmem:[#allocation7 + $0x150] sm:$0xff]
    %v122 = vld [vmem:[#allocation7 + $0x158] sm:$0xff]
    %v123 = vld [vmem:[#allocation7 + $0x160] sm:$0xff]
    %v124 = vld [vmem:[#allocation7 + $0x168] sm:$0xff]
    %v125 = vld [vmem:[#allocation7 + $0x170] sm:$0xff]
    %v126 = vld [vmem:[#allocation7 + $0x178] sm:$0xff]
    %v127 = vld [vmem:[#allocation7 + $0x180] sm:$0xff]
    %v128 = vld [vmem:[#allocation7 + $0x188] sm:$0xff]
    %v129 = vld [vmem:[#allocation7 + $0x190] sm:$0xff]
    %v130 = vld [vmem:[#allocation7 + $0x198] sm:$0xff]
    %v131 = vld [vmem:[#allocation7 + $0x1a0] sm:$0xff]
    %v132 = vld [vmem:[#allocation7 + $0x1a8] sm:$0xff]
    %v133 = vld [vmem:[#allocation7 + $0x1b0] sm:$0xff]
    %v134 = vld [vmem:[#allocation7 + $0x1b8] sm:$0xff]
    %v135 = vld [vmem:[#allocation7 + $0x1c0] sm:$0xff]
    %v136 = vld [vmem:[#allocation7 + $0x1c8] sm:$0xff]
    %v137 = vld [vmem:[#allocation7 + $0x1d0] sm:$0xff]
    %v138 = vld [vmem:[#allocation7 + $0x1d8] sm:$0xff]
    %v139 = vld [vmem:[#allocation7 + $0x1e0] sm:$0xff]
    %v140 = vld [vmem:[#allocation7 + $0x1e8] sm:$0xff]
    %v141 = vld [vmem:[#allocation7 + $0x1f0] sm:$0xff]
    %v142 = vld [vmem:[#allocation7 + $0x1f8] sm:$0xff]
    %v143 = vld [vmem:[%s3] sm:$0xf]
    %v145 = vlaneseq
    %v146 = vshrl.u32 %v145, 7
    %v147 = vsub.s32 0, %v146
    %v148 = vrot.slane %v143, %v147
    %v149 = vlaneseq
    %v150 = vshrl.u32 %v149, 7
    %v151 = vsub.s32 1, %v150
    %v152 = vrot.slane %v143, %v151
    %v153 = vlaneseq
    %v154 = vshrl.u32 %v153, 7
    %v155 = vsub.s32 2, %v154
    %v156 = vrot.slane %v143, %v155
    %v157 = vlaneseq
    %v158 = vshrl.u32 %v157, 7
    %v159 = vsub.s32 3, %v158
    %v160 = vrot.slane %v143, %v159
    %v165 = vld [vmem:[#allocation2] sm:$0xf]
    %v230 = vunpack.c.l.b16 %v79
    %v231 = vunpack.c.h.b16 %v79
    %v232 = vunpack.c.l.b16 %v80
    %v233 = vunpack.c.h.b16 %v80
    %v234 = vunpack.c.l.b16 %v81
    %v235 = vunpack.c.h.b16 %v81
    %v236 = vunpack.c.l.b16 %v82
    %v237 = vunpack.c.h.b16 %v82
    %v238 = vunpack.c.l.b16 %v83
    %v239 = vunpack.c.h.b16 %v83
    %v240 = vunpack.c.l.b16 %v84
    %v241 = vunpack.c.h.b16 %v84
    %v242 = vunpack.c.l.b16 %v85
    %v243 = vunpack.c.h.b16 %v85
    %v244 = vunpack.c.l.b16 %v86
    %v245 = vunpack.c.h.b16 %v86
    %v246 = vunpack.c.l.b16 %v87
    %v247 = vunpack.c.h.b16 %v87
    %v248 = vunpack.c.l.b16 %v88
    %v249 = vunpack.c.h.b16 %v88
    %v250 = vunpack.c.l.b16 %v89
    %v251 = vunpack.c.h.b16 %v89
    %v252 = vunpack.c.l.b16 %v90
    %v253 = vunpack.c.h.b16 %v90
    %v254 = vunpack.c.l.b16 %v91
    %v255 = vunpack.c.h.b16 %v91
    %v256 = vunpack.c.l.b16 %v92
    %v257 = vunpack.c.h.b16 %v92
    %v258 = vunpack.c.l.b16 %v93
    %v259 = vunpack.c.h.b16 %v93
    %v260 = vunpack.c.l.b16 %v94
    %v261 = vunpack.c.h.b16 %v94
    %v262 = vunpack.c.l.b16 %v95
    %v263 = vunpack.c.h.b16 %v95
    %v264 = vunpack.c.l.b16 %v96
    %v265 = vunpack.c.h.b16 %v96
    %v266 = vunpack.c.l.b16 %v97
    %v267 = vunpack.c.h.b16 %v97
    %v268 = vunpack.c.l.b16 %v98
    %v269 = vunpack.c.h.b16 %v98
    %v270 = vunpack.c.l.b16 %v99
    %v271 = vunpack.c.h.b16 %v99
    %v272 = vunpack.c.l.b16 %v100
    %v273 = vunpack.c.h.b16 %v100
    %v274 = vunpack.c.l.b16 %v101
    %v275 = vunpack.c.h.b16 %v101
    %v276 = vunpack.c.l.b16 %v102
    %v277 = vunpack.c.h.b16 %v102
    %v278 = vunpack.c.l.b16 %v103
    %v279 = vunpack.c.h.b16 %v103
    %v280 = vunpack.c.l.b16 %v104
    %v281 = vunpack.c.h.b16 %v104
    %v282 = vunpack.c.l.b16 %v105
    %v283 = vunpack.c.h.b16 %v105
    %v284 = vunpack.c.l.b16 %v106
    %v285 = vunpack.c.h.b16 %v106
    %v286 = vunpack.c.l.b16 %v107
    %v287 = vunpack.c.h.b16 %v107
    %v288 = vunpack.c.l.b16 %v108
    %v289 = vunpack.c.h.b16 %v108
    %v290 = vunpack.c.l.b16 %v109
    %v291 = vunpack.c.h.b16 %v109
    %v292 = vunpack.c.l.b16 %v110
    %v293 = vunpack.c.h.b16 %v110
    %v294 = vunpack.c.l.b16 %v111
    %v295 = vunpack.c.h.b16 %v111
    %v296 = vunpack.c.l.b16 %v112
    %v297 = vunpack.c.h.b16 %v112
    %v298 = vunpack.c.l.b16 %v113
    %v299 = vunpack.c.h.b16 %v113
    %v300 = vunpack.c.l.b16 %v114
    %v301 = vunpack.c.h.b16 %v114
    %v302 = vunpack.c.l.b16 %v115
    %v303 = vunpack.c.h.b16 %v115
    %v304 = vunpack.c.l.b16 %v116
    %v305 = vunpack.c.h.b16 %v116
    %v306 = vunpack.c.l.b16 %v117
    %v307 = vunpack.c.h.b16 %v117
    %v308 = vunpack.c.l.b16 %v118
    %v309 = vunpack.c.h.b16 %v118
    %v310 = vunpack.c.l.b16 %v119
    %v311 = vunpack.c.h.b16 %v119
    %v312 = vunpack.c.l.b16 %v120
    %v313 = vunpack.c.h.b16 %v120
    %v314 = vunpack.c.l.b16 %v121
    %v315 = vunpack.c.h.b16 %v121
    %v316 = vunpack.c.l.b16 %v122
    %v317 = vunpack.c.h.b16 %v122
    %v318 = vunpack.c.l.b16 %v123
    %v319 = vunpack.c.h.b16 %v123
    %v320 = vunpack.c.l.b16 %v124
    %v321 = vunpack.c.h.b16 %v124
    %v322 = vunpack.c.l.b16 %v125
    %v323 = vunpack.c.h.b16 %v125
    %v324 = vunpack.c.l.b16 %v126
    %v325 = vunpack.c.h.b16 %v126
    %v326 = vunpack.c.l.b16 %v127
    %v327 = vunpack.c.h.b16 %v127
    %v328 = vunpack.c.l.b16 %v128
    %v329 = vunpack.c.h.b16 %v128
    %v330 = vunpack.c.l.b16 %v129
    %v331 = vunpack.c.h.b16 %v129
    %v332 = vunpack.c.l.b16 %v130
    %v333 = vunpack.c.h.b16 %v130
    %v334 = vunpack.c.l.b16 %v131
    %v335 = vunpack.c.h.b16 %v131
    %v336 = vunpack.c.l.b16 %v132
    %v337 = vunpack.c.h.b16 %v132
    %v338 = vunpack.c.l.b16 %v133
    %v339 = vunpack.c.h.b16 %v133
    %v340 = vunpack.c.l.b16 %v134
    %v341 = vunpack.c.h.b16 %v134
    %v342 = vunpack.c.l.b16 %v135
    %v343 = vunpack.c.h.b16 %v135
    %v344 = vunpack.c.l.b16 %v136
    %v345 = vunpack.c.h.b16 %v136
    %v346 = vunpack.c.l.b16 %v137
    %v347 = vunpack.c.h.b16 %v137
    %v348 = vunpack.c.l.b16 %v138
    %v349 = vunpack.c.h.b16 %v138
    %v350 = vunpack.c.l.b16 %v139
    %v351 = vunpack.c.h.b16 %v139
    %v352 = vunpack.c.l.b16 %v140
    %v353 = vunpack.c.h.b16 %v140
    %v354 = vunpack.c.l.b16 %v141
    %v355 = vunpack.c.h.b16 %v141
    %v356 = vunpack.c.l.b16 %v142
    %v357 = vunpack.c.h.b16 %v142
    %v358 = vpack.c.b16 %v234, %v230
    %v359 = vpack.c.b16 %v235, %v231
    %v360 = vpack.c.b16 %v236, %v232
    %v361 = vpack.c.b16 %v237, %v233
    %v362 = vpack.c.b16 %v242, %v238
    %v363 = vpack.c.b16 %v243, %v239
    %v364 = vpack.c.b16 %v244, %v240
    %v365 = vpack.c.b16 %v245, %v241
    %v366 = vpack.c.b16 %v250, %v246
    %v367 = vpack.c.b16 %v251, %v247
    %v368 = vpack.c.b16 %v252, %v248
    %v369 = vpack.c.b16 %v253, %v249
    %v370 = vpack.c.b16 %v258, %v254
    %v371 = vpack.c.b16 %v259, %v255
    %v372 = vpack.c.b16 %v260, %v256
    %v373 = vpack.c.b16 %v261, %v257
    %v374 = vpack.c.b16 %v266, %v262
    %v375 = vpack.c.b16 %v267, %v263
    %v376 = vpack.c.b16 %v268, %v264
    %v377 = vpack.c.b16 %v269, %v265
    %v378 = vpack.c.b16 %v274, %v270
    %v379 = vpack.c.b16 %v275, %v271
    %v380 = vpack.c.b16 %v276, %v272
    %v381 = vpack.c.b16 %v277, %v273
    %v382 = vpack.c.b16 %v282, %v278
    %v383 = vpack.c.b16 %v283, %v279
    %v384 = vpack.c.b16 %v284, %v280
    %v385 = vpack.c.b16 %v285, %v281
    %v386 = vpack.c.b16 %v290, %v286
    %v387 = vpack.c.b16 %v291, %v287
    %v388 = vpack.c.b16 %v292, %v288
    %v389 = vpack.c.b16 %v293, %v289
    %v390 = vpack.c.b16 %v298, %v294
    %v391 = vpack.c.b16 %v299, %v295
    %v392 = vpack.c.b16 %v300, %v296
    %v393 = vpack.c.b16 %v301, %v297
    %v394 = vpack.c.b16 %v306, %v302
    %v395 = vpack.c.b16 %v307, %v303
    %v396 = vpack.c.b16 %v308, %v304
    %v397 = vpack.c.b16 %v309, %v305
    %v398 = vpack.c.b16 %v314, %v310
    %v399 = vpack.c.b16 %v315, %v311
    %v400 = vpack.c.b16 %v316, %v312
    %v401 = vpack.c.b16 %v317, %v313
    %v402 = vpack.c.b16 %v322, %v318
    %v403 = vpack.c.b16 %v323, %v319
    %v404 = vpack.c.b16 %v324, %v320
    %v405 = vpack.c.b16 %v325, %v321
    %v406 = vpack.c.b16 %v330, %v326
    %v407 = vpack.c.b16 %v331, %v327
    %v408 = vpack.c.b16 %v332, %v328
    %v409 = vpack.c.b16 %v333, %v329
    %v410 = vpack.c.b16 %v338, %v334
    %v411 = vpack.c.b16 %v339, %v335
    %v412 = vpack.c.b16 %v340, %v336
    %v413 = vpack.c.b16 %v341, %v337
    %v414 = vpack.c.b16 %v346, %v342
    %v415 = vpack.c.b16 %v347, %v343
    %v416 = vpack.c.b16 %v348, %v344
    %v417 = vpack.c.b16 %v349, %v345
    %v418 = vpack.c.b16 %v354, %v350
    %v419 = vpack.c.b16 %v355, %v351
    %v420 = vpack.c.b16 %v356, %v352
    %v421 = vpack.c.b16 %v357, %v353
    %486 = vmatprep.subr.bf16.mxu0 %v359
    %487 = vmatpush1.bf16.msra.mxu0 %v358
    %488 = vmatprep.subr.bf16.mxu0 %v363
    %489 = vmatpush1.bf16.msra.mxu0 %v362
    %490 = vmatprep.subr.bf16.mxu0 %v367
    %491 = vmatpush1.bf16.msra.mxu0 %v366
    %492 = vmatprep.subr.bf16.mxu0 %v371
    %493 = vmatpush1.bf16.msra.mxu0 %v370
    %494 = vmatprep.subr.bf16.mxu0 %v375
    %495 = vmatpush1.bf16.msra.mxu0 %v374
    %496 = vmatprep.subr.bf16.mxu0 %v379
    %497 = vmatpush1.bf16.msra.mxu0 %v378
    %498 = vmatprep.subr.bf16.mxu0 %v383
    %499 = vmatpush1.bf16.msra.mxu0 %v382
    %500 = vmatprep.subr.bf16.mxu0 %v387
    %501 = vmatpush1.bf16.msra.mxu0 %v386
    %502 = vmatprep.subr.bf16.mxu0 %v391
    %503 = vmatpush1.bf16.msra.mxu0 %v390
    %504 = vmatprep.subr.bf16.mxu0 %v395
    %505 = vmatpush1.bf16.msra.mxu0 %v394
    %506 = vmatprep.subr.bf16.mxu0 %v399
    %507 = vmatpush1.bf16.msra.mxu0 %v398
    %508 = vmatprep.subr.bf16.mxu0 %v403
    %509 = vmatpush1.bf16.msra.mxu0 %v402
    %510 = vmatprep.subr.bf16.mxu0 %v407
    %511 = vmatpush1.bf16.msra.mxu0 %v406
    %512 = vmatprep.subr.bf16.mxu0 %v411
    %513 = vmatpush1.bf16.msra.mxu0 %v410
    %514 = vmatprep.subr.bf16.mxu0 %v415
    %515 = vmatpush1.bf16.msra.mxu0 %v414
    %516 = vmatprep.subr.bf16.mxu0 %v419
    %517 = vmatpush1.bf16.msra.mxu0 %v418
    %518 = vmatprep.mubr.bf16.mxu0 0
    %519 = vmatmul.mubr.bf16.gmra.mrb[0].mxu0 %v165
    %v520 = vpop.f32.mrb[0].mxu0
    %v521 = vadd.f32 %v148, %v520
    %v522 = vpop.f32.mrb[0].mxu0
    %v523 = vadd.f32 %v152, %v522
    %v524 = vpop.f32.mrb[0].mxu0
    %v525 = vpop.f32.mrb[0].mxu0
    %526 = vdwg.mxu0
    %527 = vmatprep.subr.bf16.mxu0 %v361
    %528 = vmatpush1.bf16.msra.mxu0 %v360
    %529 = vmatprep.subr.bf16.mxu0 %v365
    %530 = vmatpush1.bf16.msra.mxu0 %v364
    %531 = vmatprep.subr.bf16.mxu0 %v369
    %532 = vmatpush1.bf16.msra.mxu0 %v368
    %533 = vmatprep.subr.bf16.mxu0 %v373
    %534 = vmatpush1.bf16.msra.mxu0 %v372
    %535 = vmatprep.subr.bf16.mxu0 %v377
    %536 = vmatpush1.bf16.msra.mxu0 %v376
    %537 = vmatprep.subr.bf16.mxu0 %v381
    %538 = vmatpush1.bf16.msra.mxu0 %v380
    %539 = vmatprep.subr.bf16.mxu0 %v385
    %540 = vmatpush1.bf16.msra.mxu0 %v384
    %541 = vmatprep.subr.bf16.mxu0 %v389
    %542 = vmatpush1.bf16.msra.mxu0 %v388
    %543 = vmatprep.subr.bf16.mxu0 %v393
    %544 = vmatpush1.bf16.msra.mxu0 %v392
    %545 = vmatprep.subr.bf16.mxu0 %v397
    %546 = vmatpush1.bf16.msra.mxu0 %v396
    %547 = vmatprep.subr.bf16.mxu0 %v401
    %548 = vmatpush1.bf16.msra.mxu0 %v400
    %549 = vmatprep.subr.bf16.mxu0 %v405
    %550 = vmatpush1.bf16.msra.mxu0 %v404
    %551 = vmatprep.subr.bf16.mxu0 %v409
    %552 = vmatpush1.bf16.msra.mxu0 %v408
    %553 = vmatprep.subr.bf16.mxu0 %v413
    %554 = vmatpush1.bf16.msra.mxu0 %v412
    %555 = vmatprep.subr.bf16.mxu0 %v417
    %556 = vmatpush1.bf16.msra.mxu0 %v416
    %557 = vmatprep.subr.bf16.mxu0 %v421
    %558 = vmatpush1.bf16.msra.mxu0 %v420
    %559 = vmatprep.mubr.bf16.mxu0 0
    %560 = vmatmul.mubr.bf16.gmra.mrb[0].mxu0 %v165
    %v561 = vpop.f32.mrb[0].mxu0
    %v562 = vadd.f32 %v156, %v561
    %v563 = vpop.f32.mrb[0].mxu0
    %v564 = vadd.f32 %v160, %v563
    %v565 = vpop.f32.mrb[0].mxu0
    %v566 = vpop.f32.mrb[0].mxu0
    %567 = vdwg.mxu0
    %v568 = vxor.u32 %v521, 2147483648
    %v569 = vmul.f32 %v568, 1.442695
    %v570 = vpow.pop %v569
    %v571 = vadd.f32 %v570, 1.0
    %v572 = vrcp.pop %v571
    %v573 = vmul.f32 1.0, %v572
    %v574 = vxor.u32 %v523, 2147483648
    %v575 = vmul.f32 %v574, 1.442695
    %v576 = vpow.pop %v575
    %v577 = vadd.f32 %v576, 1.0
    %v578 = vrcp.pop %v577
    %v579 = vmul.f32 1.0, %v578
    %v580 = vtanh.pop %v562
    %v581 = vxor.u32 %v564, 2147483648
    %v582 = vmul.f32 %v581, 1.442695
    %v583 = vpow.pop %v582
    %v584 = vadd.f32 %v583, 1.0
    %v585 = vrcp.pop %v584
    %v586 = vmul.f32 1.0, %v585
    %v587 = vmul.f32 %v579, 0.0
    %v588 = vmul.f32 %v573, %v580
    %v589 = vadd.f32 %v587, %v588
    %v590 = vtanh.pop %v589
    %v591 = vmul.f32 %v586, %v590
    %vm592 = vcmp.gt.s32.totalorder %v78, 0
    %v593 = vsel %vm592, %v591, 0.0
    %v594 = vsel %vm592, %v589, 0.0
    %s595 = scalar_lea.vmem [#allocation2], 4
    %v596 = vld [vmem:[%s595] sm:$0xf]
    %v597 = vpack.c.bf16 %v593, %v593
    %598 = vmatprep.subr.bf16.mxu0 %v359
    %599 = vmatpush1.bf16.msra.mxu0 %v358
    %600 = vmatprep.subr.bf16.mxu0 %v363
    %601 = vmatpush1.bf16.msra.mxu0 %v362
    %602 = vmatprep.subr.bf16.mxu0 %v367
    %603 = vmatpush1.bf16.msra.mxu0 %v366
    %604 = vmatprep.subr.bf16.mxu0 %v371
    %605 = vmatpush1.bf16.msra.mxu0 %v370
    %606 = vmatprep.subr.bf16.mxu0 %v375
    %607 = vmatpush1.bf16.msra.mxu0 %v374
    %608 = vmatprep.subr.bf16.mxu0 %v379
    %609 = vmatpush1.bf16.msra.mxu0 %v378
    %610 = vmatprep.subr.bf16.mxu0 %v383
    %611 = vmatpush1.bf16.msra.mxu0 %v382
    %612 = vmatprep.subr.bf16.mxu0 %v387
    %613 = vmatpush1.bf16.msra.mxu0 %v386
    %614 = vmatprep.subr.bf16.mxu0 %v391
    %615 = vmatpush1.bf16.msra.mxu0 %v390
    %616 = vmatprep.subr.bf16.mxu0 %v395
    %617 = vmatpush1.bf16.msra.mxu0 %v394
    %618 = vmatprep.subr.bf16.mxu0 %v399
    %619 = vmatpush1.bf16.msra.mxu0 %v398
    %620 = vmatprep.subr.bf16.mxu0 %v403
    %621 = vmatpush1.bf16.msra.mxu0 %v402
    %622 = vmatprep.subr.bf16.mxu0 %v407
    %623 = vmatpush1.bf16.msra.mxu0 %v406
    %624 = vmatprep.subr.bf16.mxu0 %v411
    %625 = vmatpush1.bf16.msra.mxu0 %v410
    %626 = vmatprep.subr.bf16.mxu0 %v415
    %627 = vmatpush1.bf16.msra.mxu0 %v414
    %628 = vmatprep.subr.bf16.mxu0 %v419
    %629 = vmatpush1.bf16.msra.mxu0 %v418
    %630 = vmatprep.mubr.bf16.mxu0 %v597
    %631 = vmatmul.mubr.bf16.gmra.mrb[0].mxu0 %v596
    %v632 = vpop.f32.mrb[0].mxu0
    %v633 = vadd.f32 %v148, %v632
    %v634 = vpop.f32.mrb[0].mxu0
    %v635 = vadd.f32 %v152, %v634
    %v636 = vpop.f32.mrb[0].mxu0
    %v637 = vpop.f32.mrb[0].mxu0
    %638 = vdwg.mxu0
    %639 = vmatprep.subr.bf16.mxu0 %v361
    %640 = vmatpush1.bf16.msra.mxu0 %v360
    %641 = vmatprep.subr.bf16.mxu0 %v365
    %642 = vmatpush1.bf16.msra.mxu0 %v364
    %643 = vmatprep.subr.bf16.mxu0 %v369
    %644 = vmatpush1.bf16.msra.mxu0 %v368
    %645 = vmatprep.subr.bf16.mxu0 %v373
    %646 = vmatpush1.bf16.msra.mxu0 %v372
    %647 = vmatprep.subr.bf16.mxu0 %v377
    %648 = vmatpush1.bf16.msra.mxu0 %v376
    %649 = vmatprep.subr.bf16.mxu0 %v381
    %650 = vmatpush1.bf16.msra.mxu0 %v380
    %651 = vmatprep.subr.bf16.mxu0 %v385
    %652 = vmatpush1.bf16.msra.mxu0 %v384
    %653 = vmatprep.subr.bf16.mxu0 %v389
    %654 = vmatpush1.bf16.msra.mxu0 %v388
    %655 = vmatprep.subr.bf16.mxu0 %v393
    %656 = vmatpush1.bf16.msra.mxu0 %v392
    %657 = vmatprep.subr.bf16.mxu0 %v397
    %658 = vmatpush1.bf16.msra.mxu0 %v396
    %659 = vmatprep.subr.bf16.mxu0 %v401
    %660 = vmatpush1.bf16.msra.mxu0 %v400
    %661 = vmatprep.subr.bf16.mxu0 %v405
    %662 = vmatpush1.bf16.msra.mxu0 %v404
    %663 = vmatprep.subr.bf16.mxu0 %v409
    %664 = vmatpush1.bf16.msra.mxu0 %v408
    %665 = vmatprep.subr.bf16.mxu0 %v413
    %666 = vmatpush1.bf16.msra.mxu0 %v412
    %667 = vmatprep.subr.bf16.mxu0 %v417
    %668 = vmatpush1.bf16.msra.mxu0 %v416
    %669 = vmatprep.subr.bf16.mxu0 %v421
    %670 = vmatpush1.bf16.msra.mxu0 %v420
    %671 = vmatprep.mubr.bf16.mxu0 %v597
    %672 = vmatmul.mubr.bf16.gmra.mrb[0].mxu0 %v596
    %v673 = vpop.f32.mrb[0].mxu0
    %v674 = vadd.f32 %v156, %v673
    %v675 = vpop.f32.mrb[0].mxu0
    %v676 = vadd.f32 %v160, %v675
    %v677 = vpop.f32.mrb[0].mxu0
    %v678 = vpop.f32.mrb[0].mxu0
    %679 = vdwg.mxu0
    %v680 = vxor.u32 %v633, 2147483648
    %v681 = vmul.f32 %v680, 1.442695
    %v682 = vpow.pop %v681
    %v683 = vadd.f32 %v682, 1.0
    %v684 = vrcp.pop %v683
    %v685 = vmul.f32 1.0, %v684
    %v686 = vxor.u32 %v635, 2147483648
    %v687 = vmul.f32 %v686, 1.442695
    %v688 = vpow.pop %v687
    %v689 = vadd.f32 %v688, 1.0
    %v690 = vrcp.pop %v689
    %v691 = vmul.f32 1.0, %v690
    %v692 = vtanh.pop %v674
    %v693 = vxor.u32 %v676, 2147483648
    %v694 = vmul.f32 %v693, 1.442695
    %v695 = vpow.pop %v694
    %v696 = vadd.f32 %v695, 1.0
    %v697 = vrcp.pop %v696
    %v698 = vmul.f32 1.0, %v697
    %v699 = vmul.f32 %v691, %v594
    %v700 = vmul.f32 %v685, %v692
    %v701 = vadd.f32 %v699, %v700
    %v702 = vtanh.pop %v701
    %v703 = vmul.f32 %v698, %v702
    %vm704 = vcmp.gt.s32.totalorder %v78, 1
    %v705 = vsel %vm704, %v703, %v593
    %v706 = vsel %vm704, %v701, %v594
    %s707 = scalar_lea.vmem [#allocation2], 8
    %v708 = vld [vmem:[%s707] sm:$0xf]
    %v709 = vpack.c.bf16 %v705, %v705
    %710 = vmatprep.subr.bf16.mxu0 %v359
    %711 = vmatpush1.bf16.msra.mxu0 %v358
    %712 = vmatprep.subr.bf16.mxu0 %v363
    %713 = vmatpush1.bf16.msra.mxu0 %v362
    %714 = vmatprep.subr.bf16.mxu0 %v367
    %715 = vmatpush1.bf16.msra.mxu0 %v366
    %716 = vmatprep.subr.bf16.mxu0 %v371
    %717 = vmatpush1.bf16.msra.mxu0 %v370
    %718 = vmatprep.subr.bf16.mxu0 %v375
    %719 = vmatpush1.bf16.msra.mxu0 %v374
    %720 = vmatprep.subr.bf16.mxu0 %v379
    %721 = vmatpush1.bf16.msra.mxu0 %v378
    %722 = vmatprep.subr.bf16.mxu0 %v383
    %723 = vmatpush1.bf16.msra.mxu0 %v382
    %724 = vmatprep.subr.bf16.mxu0 %v387
    %725 = vmatpush1.bf16.msra.mxu0 %v386
    %726 = vmatprep.subr.bf16.mxu0 %v391
    %727 = vmatpush1.bf16.msra.mxu0 %v390
    %728 = vmatprep.subr.bf16.mxu0 %v395
    %729 = vmatpush1.bf16.msra.mxu0 %v394
    %730 = vmatprep.subr.bf16.mxu0 %v399
    %731 = vmatpush1.bf16.msra.mxu0 %v398
    %732 = vmatprep.subr.bf16.mxu0 %v403
    %733 = vmatpush1.bf16.msra.mxu0 %v402
    %734 = vmatprep.subr.bf16.mxu0 %v407
    %735 = vmatpush1.bf16.msra.mxu0 %v406
    %736 = vmatprep.subr.bf16.mxu0 %v411
    %737 = vmatpush1.bf16.msra.mxu0 %v410
    %738 = vmatprep.subr.bf16.mxu0 %v415
    %739 = vmatpush1.bf16.msra.mxu0 %v414
    %740 = vmatprep.subr.bf16.mxu0 %v419
    %741 = vmatpush1.bf16.msra.mxu0 %v418
    %742 = vmatprep.mubr.bf16.mxu0 %v709
    %743 = vmatmul.mubr.bf16.gmra.mrb[0].mxu0 %v708
    %v744 = vpop.f32.mrb[0].mxu0
    %v745 = vadd.f32 %v148, %v744
    %v746 = vpop.f32.mrb[0].mxu0
    %v747 = vadd.f32 %v152, %v746
    %v748 = vpop.f32.mrb[0].mxu0
    %v749 = vpop.f32.mrb[0].mxu0
    %750 = vdwg.mxu0
    %751 = vmatprep.subr.bf16.mxu0 %v361
    %752 = vmatpush1.bf16.msra.mxu0 %v360
    %753 = vmatprep.subr.bf16.mxu0 %v365
    %754 = vmatpush1.bf16.msra.mxu0 %v364
    %755 = vmatprep.subr.bf16.mxu0 %v369
    %756 = vmatpush1.bf16.msra.mxu0 %v368
    %757 = vmatprep.subr.bf16.mxu0 %v373
    %758 = vmatpush1.bf16.msra.mxu0 %v372
    %759 = vmatprep.subr.bf16.mxu0 %v377
    %760 = vmatpush1.bf16.msra.mxu0 %v376
    %761 = vmatprep.subr.bf16.mxu0 %v381
    %762 = vmatpush1.bf16.msra.mxu0 %v380
    %763 = vmatprep.subr.bf16.mxu0 %v385
    %764 = vmatpush1.bf16.msra.mxu0 %v384
    %765 = vmatprep.subr.bf16.mxu0 %v389
    %766 = vmatpush1.bf16.msra.mxu0 %v388
    %767 = vmatprep.subr.bf16.mxu0 %v393
    %768 = vmatpush1.bf16.msra.mxu0 %v392
    %769 = vmatprep.subr.bf16.mxu0 %v397
    %770 = vmatpush1.bf16.msra.mxu0 %v396
    %771 = vmatprep.subr.bf16.mxu0 %v401
    %772 = vmatpush1.bf16.msra.mxu0 %v400
    %773 = vmatprep.subr.bf16.mxu0 %v405
    %774 = vmatpush1.bf16.msra.mxu0 %v404
    %775 = vmatprep.subr.bf16.mxu0 %v409
    %776 = vmatpush1.bf16.msra.mxu0 %v408
    %777 = vmatprep.subr.bf16.mxu0 %v413
    %778 = vmatpush1.bf16.msra.mxu0 %v412
    %779 = vmatprep.subr.bf16.mxu0 %v417
    %780 = vmatpush1.bf16.msra.mxu0 %v416
    %781 = vmatprep.subr.bf16.mxu0 %v421
    %782 = vmatpush1.bf16.msra.mxu0 %v420
    %783 = vmatprep.mubr.bf16.mxu0 %v709
    %784 = vmatmul.mubr.bf16.gmra.mrb[0].mxu0 %v708
    %v785 = vpop.f32.mrb[0].mxu0
    %v786 = vadd.f32 %v156, %v785
    %v787 = vpop.f32.mrb[0].mxu0
    %v788 = vadd.f32 %v160, %v787
    %v789 = vpop.f32.mrb[0].mxu0
    %v790 = vpop.f32.mrb[0].mxu0
    %791 = vdwg.mxu0
    %v792 = vxor.u32 %v745, 2147483648
    %v793 = vmul.f32 %v792, 1.442695
    %v794 = vpow.pop %v793
    %v795 = vadd.f32 %v794, 1.0
    %v796 = vrcp.pop %v795
    %v797 = vmul.f32 1.0, %v796
    %v798 = vxor.u32 %v747, 2147483648
    %v799 = vmul.f32 %v798, 1.442695
    %v800 = vpow.pop %v799
    %v801 = vadd.f32 %v800, 1.0
    %v802 = vrcp.pop %v801
    %v803 = vmul.f32 1.0, %v802
    %v804 = vtanh.pop %v786
    %v805 = vxor.u32 %v788, 2147483648
    %v806 = vmul.f32 %v805, 1.442695
    %v807 = vpow.pop %v806
    %v808 = vadd.f32 %v807, 1.0
    %v809 = vrcp.pop %v808
    %v810 = vmul.f32 1.0, %v809
    %v811 = vmul.f32 %v803, %v706
    %v812 = vmul.f32 %v797, %v804
    %v813 = vadd.f32 %v811, %v812
    %v814 = vtanh.pop %v813
    %v815 = vmul.f32 %v810, %v814
    %vm816 = vcmp.gt.s32.totalorder %v78, 2
    %v817 = vsel %vm816, %v815, %v705
    %v818 = vsel %vm816, %v813, %v706
    %s819 = scalar_lea.vmem [#allocation2], 12
    %v820 = vld [vmem:[%s819] sm:$0xf]
    %v821 = vpack.c.bf16 %v817, %v817
    %822 = vmatprep.subr.bf16.mxu0 %v359
    %823 = vmatpush1.bf16.msra.mxu0 %v358
    %824 = vmatprep.subr.bf16.mxu0 %v363
    %825 = vmatpush1.bf16.msra.mxu0 %v362
    %826 = vmatprep.subr.bf16.mxu0 %v367
    %827 = vmatpush1.bf16.msra.mxu0 %v366
    %828 = vmatprep.subr.bf16.mxu0 %v371
    %829 = vmatpush1.bf16.msra.mxu0 %v370
    %830 = vmatprep.subr.bf16.mxu0 %v375
    %831 = vmatpush1.bf16.msra.mxu0 %v374
    %832 = vmatprep.subr.bf16.mxu0 %v379
    %833 = vmatpush1.bf16.msra.mxu0 %v378
    %834 = vmatprep.subr.bf16.mxu0 %v383
    %835 = vmatpush1.bf16.msra.mxu0 %v382
    %836 = vmatprep.subr.bf16.mxu0 %v387
    %837 = vmatpush1.bf16.msra.mxu0 %v386
    %838 = vmatprep.subr.bf16.mxu0 %v391
    %839 = vmatpush1.bf16.msra.mxu0 %v390
    %840 = vmatprep.subr.bf16.mxu0 %v395
    %841 = vmatpush1.bf16.msra.mxu0 %v394
    %842 = vmatprep.subr.bf16.mxu0 %v399
    %843 = vmatpush1.bf16.msra.mxu0 %v398
    %844 = vmatprep.subr.bf16.mxu0 %v403
    %845 = vmatpush1.bf16.msra.mxu0 %v402
    %846 = vmatprep.subr.bf16.mxu0 %v407
    %847 = vmatpush1.bf16.msra.mxu0 %v406
    %848 = vmatprep.subr.bf16.mxu0 %v411
    %849 = vmatpush1.bf16.msra.mxu0 %v410
    %850 = vmatprep.subr.bf16.mxu0 %v415
    %851 = vmatpush1.bf16.msra.mxu0 %v414
    %852 = vmatprep.subr.bf16.mxu0 %v419
    %853 = vmatpush1.bf16.msra.mxu0 %v418
    %854 = vmatprep.mubr.bf16.mxu0 %v821
    %855 = vmatmul.mubr.bf16.gmra.mrb[0].mxu0 %v820
    %v856 = vpop.f32.mrb[0].mxu0
    %v857 = vadd.f32 %v148, %v856
    %v858 = vpop.f32.mrb[0].mxu0
    %v859 = vadd.f32 %v152, %v858
    %v860 = vpop.f32.mrb[0].mxu0
    %v861 = vpop.f32.mrb[0].mxu0
    %862 = vdwg.mxu0
    %863 = vmatprep.subr.bf16.mxu0 %v361
    %864 = vmatpush1.bf16.msra.mxu0 %v360
    %865 = vmatprep.subr.bf16.mxu0 %v365
    %866 = vmatpush1.bf16.msra.mxu0 %v364
    %867 = vmatprep.subr.bf16.mxu0 %v369
    %868 = vmatpush1.bf16.msra.mxu0 %v368
    %869 = vmatprep.subr.bf16.mxu0 %v373
    %870 = vmatpush1.bf16.msra.mxu0 %v372
    %871 = vmatprep.subr.bf16.mxu0 %v377
    %872 = vmatpush1.bf16.msra.mxu0 %v376
    %873 = vmatprep.subr.bf16.mxu0 %v381
    %874 = vmatpush1.bf16.msra.mxu0 %v380
    %875 = vmatprep.subr.bf16.mxu0 %v385
    %876 = vmatpush1.bf16.msra.mxu0 %v384
    %877 = vmatprep.subr.bf16.mxu0 %v389
    %878 = vmatpush1.bf16.msra.mxu0 %v388
    %879 = vmatprep.subr.bf16.mxu0 %v393
    %880 = vmatpush1.bf16.msra.mxu0 %v392
    %881 = vmatprep.subr.bf16.mxu0 %v397
    %882 = vmatpush1.bf16.msra.mxu0 %v396
    %883 = vmatprep.subr.bf16.mxu0 %v401
    %884 = vmatpush1.bf16.msra.mxu0 %v400
    %885 = vmatprep.subr.bf16.mxu0 %v405
    %886 = vmatpush1.bf16.msra.mxu0 %v404
    %887 = vmatprep.subr.bf16.mxu0 %v409
    %888 = vmatpush1.bf16.msra.mxu0 %v408
    %889 = vmatprep.subr.bf16.mxu0 %v413
    %890 = vmatpush1.bf16.msra.mxu0 %v412
    %891 = vmatprep.subr.bf16.mxu0 %v417
    %892 = vmatpush1.bf16.msra.mxu0 %v416
    %893 = vmatprep.subr.bf16.mxu0 %v421
    %894 = vmatpush1.bf16.msra.mxu0 %v420
    %895 = vmatprep.mubr.bf16.mxu0 %v821
    %896 = vmatmul.mubr.bf16.gmra.mrb[0].mxu0 %v820
    %v897 = vpop.f32.mrb[0].mxu0
    %v898 = vadd.f32 %v156, %v897
    %v899 = vpop.f32.mrb[0].mxu0
    %v900 = vadd.f32 %v160, %v899
    %v901 = vpop.f32.mrb[0].mxu0
    %v902 = vpop.f32.mrb[0].mxu0
    %903 = vdwg.mxu0
    %v904 = vxor.u32 %v857, 2147483648
    %v905 = vmul.f32 %v904, 1.442695
    %v906 = vpow.pop %v905
    %v907 = vadd.f32 %v906, 1.0
    %v908 = vrcp.pop %v907
    %v909 = vmul.f32 1.0, %v908
    %v910 = vxor.u32 %v859, 2147483648
    %v911 = vmul.f32 %v910, 1.442695
    %v912 = vpow.pop %v911
    %v913 = vadd.f32 %v912, 1.0
    %v914 = vrcp.pop %v913
    %v915 = vmul.f32 1.0, %v914
    %v916 = vtanh.pop %v898
    %v917 = vxor.u32 %v900, 2147483648
    %v918 = vmul.f32 %v917, 1.442695
    %v919 = vpow.pop %v918
    %v920 = vadd.f32 %v919, 1.0
    %v921 = vrcp.pop %v920
    %v922 = vmul.f32 1.0, %v921
    %v923 = vmul.f32 %v915, %v818
    %v924 = vmul.f32 %v909, %v916
    %v925 = vadd.f32 %v923, %v924
    %v926 = vtanh.pop %v925
    %v927 = vmul.f32 %v922, %v926
    %vm928 = vcmp.gt.s32.totalorder %v78, 3
    %v929 = vsel %vm928, %v927, %v817
    %v930 = vsel %vm928, %v925, %v818
    %s931 = scalar_lea.vmem [#allocation2], 16
    %v932 = vld [vmem:[%s931] sm:$0xf]
    %v933 = vpack.c.bf16 %v929, %v929
    %934 = vmatprep.subr.bf16.mxu0 %v359
    %935 = vmatpush1.bf16.msra.mxu0 %v358
    %936 = vmatprep.subr.bf16.mxu0 %v363
    %937 = vmatpush1.bf16.msra.mxu0 %v362
    %938 = vmatprep.subr.bf16.mxu0 %v367
    %939 = vmatpush1.bf16.msra.mxu0 %v366
    %940 = vmatprep.subr.bf16.mxu0 %v371
    %941 = vmatpush1.bf16.msra.mxu0 %v370
    %942 = vmatprep.subr.bf16.mxu0 %v375
    %943 = vmatpush1.bf16.msra.mxu0 %v374
    %944 = vmatprep.subr.bf16.mxu0 %v379
    %945 = vmatpush1.bf16.msra.mxu0 %v378
    %946 = vmatprep.subr.bf16.mxu0 %v383
    %947 = vmatpush1.bf16.msra.mxu0 %v382
    %948 = vmatprep.subr.bf16.mxu0 %v387
    %949 = vmatpush1.bf16.msra.mxu0 %v386
    %950 = vmatprep.subr.bf16.mxu0 %v391
    %951 = vmatpush1.bf16.msra.mxu0 %v390
    %952 = vmatprep.subr.bf16.mxu0 %v395
    %953 = vmatpush1.bf16.msra.mxu0 %v394
    %954 = vmatprep.subr.bf16.mxu0 %v399
    %955 = vmatpush1.bf16.msra.mxu0 %v398
    %956 = vmatprep.subr.bf16.mxu0 %v403
    %957 = vmatpush1.bf16.msra.mxu0 %v402
    %958 = vmatprep.subr.bf16.mxu0 %v407
    %959 = vmatpush1.bf16.msra.mxu0 %v406
    %960 = vmatprep.subr.bf16.mxu0 %v411
    %961 = vmatpush1.bf16.msra.mxu0 %v410
    %962 = vmatprep.subr.bf16.mxu0 %v415
    %963 = vmatpush1.bf16.msra.mxu0 %v414
    %964 = vmatprep.subr.bf16.mxu0 %v419
    %965 = vmatpush1.bf16.msra.mxu0 %v418
    %966 = vmatprep.mubr.bf16.mxu0 %v933
    %967 = vmatmul.mubr.bf16.gmra.mrb[0].mxu0 %v932
    %v968 = vpop.f32.mrb[0].mxu0
    %v969 = vadd.f32 %v148, %v968
    %v970 = vpop.f32.mrb[0].mxu0
    %v971 = vadd.f32 %v152, %v970
    %v972 = vpop.f32.mrb[0].mxu0
    %v973 = vpop.f32.mrb[0].mxu0
    %974 = vdwg.mxu0
    %975 = vmatprep.subr.bf16.mxu0 %v361
    %976 = vmatpush1.bf16.msra.mxu0 %v360
    %977 = vmatprep.subr.bf16.mxu0 %v365
    %978 = vmatpush1.bf16.msra.mxu0 %v364
    %979 = vmatprep.subr.bf16.mxu0 %v369
    %980 = vmatpush1.bf16.msra.mxu0 %v368
    %981 = vmatprep.subr.bf16.mxu0 %v373
    %982 = vmatpush1.bf16.msra.mxu0 %v372
    %983 = vmatprep.subr.bf16.mxu0 %v377
    %984 = vmatpush1.bf16.msra.mxu0 %v376
    %985 = vmatprep.subr.bf16.mxu0 %v381
    %986 = vmatpush1.bf16.msra.mxu0 %v380
    %987 = vmatprep.subr.bf16.mxu0 %v385
    %988 = vmatpush1.bf16.msra.mxu0 %v384
    %989 = vmatprep.subr.bf16.mxu0 %v389
    %990 = vmatpush1.bf16.msra.mxu0 %v388
    %991 = vmatprep.subr.bf16.mxu0 %v393
    %992 = vmatpush1.bf16.msra.mxu0 %v392
    %993 = vmatprep.subr.bf16.mxu0 %v397
    %994 = vmatpush1.bf16.msra.mxu0 %v396
    %995 = vmatprep.subr.bf16.mxu0 %v401
    %996 = vmatpush1.bf16.msra.mxu0 %v400
    %997 = vmatprep.subr.bf16.mxu0 %v405
    %998 = vmatpush1.bf16.msra.mxu0 %v404
    %999 = vmatprep.subr.bf16.mxu0 %v409
    %1000 = vmatpush1.bf16.msra.mxu0 %v408
    %1001 = vmatprep.subr.bf16.mxu0 %v413
    %1002 = vmatpush1.bf16.msra.mxu0 %v412
    %1003 = vmatprep.subr.bf16.mxu0 %v417
    %1004 = vmatpush1.bf16.msra.mxu0 %v416
    %1005 = vmatprep.subr.bf16.mxu0 %v421
    %1006 = vmatpush1.bf16.msra.mxu0 %v420
    %1007 = vmatprep.mubr.bf16.mxu0 %v933
    %1008 = vmatmul.mubr.bf16.gmra.mrb[0].mxu0 %v932
    %v1009 = vpop.f32.mrb[0].mxu0
    %v1010 = vadd.f32 %v156, %v1009
    %v1011 = vpop.f32.mrb[0].mxu0
    %v1012 = vadd.f32 %v160, %v1011
    %v1013 = vpop.f32.mrb[0].mxu0
    %v1014 = vpop.f32.mrb[0].mxu0
    %1015 = vdwg.mxu0
    %v1016 = vxor.u32 %v969, 2147483648
    %v1017 = vmul.f32 %v1016, 1.442695
    %v1018 = vpow.pop %v1017
    %v1019 = vadd.f32 %v1018, 1.0
    %v1020 = vrcp.pop %v1019
    %v1021 = vmul.f32 1.0, %v1020
    %v1022 = vxor.u32 %v971, 2147483648
    %v1023 = vmul.f32 %v1022, 1.442695
    %v1024 = vpow.pop %v1023
    %v1025 = vadd.f32 %v1024, 1.0
    %v1026 = vrcp.pop %v1025
    %v1027 = vmul.f32 1.0, %v1026
    %v1028 = vtanh.pop %v1010
    %v1029 = vxor.u32 %v1012, 2147483648
    %v1030 = vmul.f32 %v1029, 1.442695
    %v1031 = vpow.pop %v1030
    %v1032 = vadd.f32 %v1031, 1.0
    %v1033 = vrcp.pop %v1032
    %v1034 = vmul.f32 1.0, %v1033
    %v1035 = vmul.f32 %v1027, %v930
    %v1036 = vmul.f32 %v1021, %v1028
    %v1037 = vadd.f32 %v1035, %v1036
    %v1038 = vtanh.pop %v1037
    %v1039 = vmul.f32 %v1034, %v1038
    %vm1040 = vcmp.gt.s32.totalorder %v78, 4
    %v1041 = vsel %vm1040, %v1039, %v929
    %v1042 = vsel %vm1040, %v1037, %v930
    %s1043 = scalar_lea.vmem [#allocation2], 20
    %v1044 = vld [vmem:[%s1043] sm:$0xf]
    %v1045 = vpack.c.bf16 %v1041, %v1041
    %1046 = vmatprep.subr.bf16.mxu0 %v359
    %1047 = vmatpush1.bf16.msra.mxu0 %v358
    %1048 = vmatprep.subr.bf16.mxu0 %v363
    %1049 = vmatpush1.bf16.msra.mxu0 %v362
    %1050 = vmatprep.subr.bf16.mxu0 %v367
    %1051 = vmatpush1.bf16.msra.mxu0 %v366
    %1052 = vmatprep.subr.bf16.mxu0 %v371
    %1053 = vmatpush1.bf16.msra.mxu0 %v370
    %1054 = vmatprep.subr.bf16.mxu0 %v375
    %1055 = vmatpush1.bf16.msra.mxu0 %v374
    %1056 = vmatprep.subr.bf16.mxu0 %v379
    %1057 = vmatpush1.bf16.msra.mxu0 %v378
    %1058 = vmatprep.subr.bf16.mxu0 %v383
    %1059 = vmatpush1.bf16.msra.mxu0 %v382
    %1060 = vmatprep.subr.bf16.mxu0 %v387
    %1061 = vmatpush1.bf16.msra.mxu0 %v386
    %1062 = vmatprep.subr.bf16.mxu0 %v391
    %1063 = vmatpush1.bf16.msra.mxu0 %v390
    %1064 = vmatprep.subr.bf16.mxu0 %v395
    %1065 = vmatpush1.bf16.msra.mxu0 %v394
    %1066 = vmatprep.subr.bf16.mxu0 %v399
    %1067 = vmatpush1.bf16.msra.mxu0 %v398
    %1068 = vmatprep.subr.bf16.mxu0 %v403
    %1069 = vmatpush1.bf16.msra.mxu0 %v402
    %1070 = vmatprep.subr.bf16.mxu0 %v407
    %1071 = vmatpush1.bf16.msra.mxu0 %v406
    %1072 = vmatprep.subr.bf16.mxu0 %v411
    %1073 = vmatpush1.bf16.msra.mxu0 %v410
    %1074 = vmatprep.subr.bf16.mxu0 %v415
    %1075 = vmatpush1.bf16.msra.mxu0 %v414
    %1076 = vmatprep.subr.bf16.mxu0 %v419
    %1077 = vmatpush1.bf16.msra.mxu0 %v418
    %1078 = vmatprep.mubr.bf16.mxu0 %v1045
    %1079 = vmatmul.mubr.bf16.gmra.mrb[0].mxu0 %v1044
    %v1080 = vpop.f32.mrb[0].mxu0
    %v1081 = vadd.f32 %v148, %v1080
    %v1082 = vpop.f32.mrb[0].mxu0
    %v1083 = vadd.f32 %v152, %v1082
    %v1084 = vpop.f32.mrb[0].mxu0
    %v1085 = vpop.f32.mrb[0].mxu0
    %1086 = vdwg.mxu0
    %1087 = vmatprep.subr.bf16.mxu0 %v361
    %1088 = vmatpush1.bf16.msra.mxu0 %v360
    %1089 = vmatprep.subr.bf16.mxu0 %v365
    %1090 = vmatpush1.bf16.msra.mxu0 %v364
    %1091 = vmatprep.subr.bf16.mxu0 %v369
    %1092 = vmatpush1.bf16.msra.mxu0 %v368
    %1093 = vmatprep.subr.bf16.mxu0 %v373
    %1094 = vmatpush1.bf16.msra.mxu0 %v372
    %1095 = vmatprep.subr.bf16.mxu0 %v377
    %1096 = vmatpush1.bf16.msra.mxu0 %v376
    %1097 = vmatprep.subr.bf16.mxu0 %v381
    %1098 = vmatpush1.bf16.msra.mxu0 %v380
    %1099 = vmatprep.subr.bf16.mxu0 %v385
    %1100 = vmatpush1.bf16.msra.mxu0 %v384
    %1101 = vmatprep.subr.bf16.mxu0 %v389
    %1102 = vmatpush1.bf16.msra.mxu0 %v388
    %1103 = vmatprep.subr.bf16.mxu0 %v393
    %1104 = vmatpush1.bf16.msra.mxu0 %v392
    %1105 = vmatprep.subr.bf16.mxu0 %v397
    %1106 = vmatpush1.bf16.msra.mxu0 %v396
    %1107 = vmatprep.subr.bf16.mxu0 %v401
    %1108 = vmatpush1.bf16.msra.mxu0 %v400
    %1109 = vmatprep.subr.bf16.mxu0 %v405
    %1110 = vmatpush1.bf16.msra.mxu0 %v404
    %1111 = vmatprep.subr.bf16.mxu0 %v409
    %1112 = vmatpush1.bf16.msra.mxu0 %v408
    %1113 = vmatprep.subr.bf16.mxu0 %v413
    %1114 = vmatpush1.bf16.msra.mxu0 %v412
    %1115 = vmatprep.subr.bf16.mxu0 %v417
    %1116 = vmatpush1.bf16.msra.mxu0 %v416
    %1117 = vmatprep.subr.bf16.mxu0 %v421
    %1118 = vmatpush1.bf16.msra.mxu0 %v420
    %1119 = vmatprep.mubr.bf16.mxu0 %v1045
    %1120 = vmatmul.mubr.bf16.gmra.mrb[0].mxu0 %v1044
    %v1121 = vpop.f32.mrb[0].mxu0
    %v1122 = vadd.f32 %v156, %v1121
    %v1123 = vpop.f32.mrb[0].mxu0
    %v1124 = vadd.f32 %v160, %v1123
    %v1125 = vpop.f32.mrb[0].mxu0
    %v1126 = vpop.f32.mrb[0].mxu0
    %1127 = vdwg.mxu0
    %v1128 = vxor.u32 %v1081, 2147483648
    %v1129 = vmul.f32 %v1128, 1.442695
    %v1130 = vpow.pop %v1129
    %v1131 = vadd.f32 %v1130, 1.0
    %v1132 = vrcp.pop %v1131
    %v1133 = vmul.f32 1.0, %v1132
    %v1134 = vxor.u32 %v1083, 2147483648
    %v1135 = vmul.f32 %v1134, 1.442695
    %v1136 = vpow.pop %v1135
    %v1137 = vadd.f32 %v1136, 1.0
    %v1138 = vrcp.pop %v1137
    %v1139 = vmul.f32 1.0, %v1138
    %v1140 = vtanh.pop %v1122
    %v1141 = vxor.u32 %v1124, 2147483648
    %v1142 = vmul.f32 %v1141, 1.442695
    %v1143 = vpow.pop %v1142
    %v1144 = vadd.f32 %v1143, 1.0
    %v1145 = vrcp.pop %v1144
    %v1146 = vmul.f32 1.0, %v1145
    %v1147 = vmul.f32 %v1139, %v1042
    %v1148 = vmul.f32 %v1133, %v1140
    %v1149 = vadd.f32 %v1147, %v1148
    %v1150 = vtanh.pop %v1149
    %v1151 = vmul.f32 %v1146, %v1150
    %vm1152 = vcmp.gt.s32.totalorder %v78, 5
    %v1153 = vsel %vm1152, %v1151, %v1041
    %v1154 = vsel %vm1152, %v1149, %v1042
    %s1155 = scalar_lea.vmem [#allocation2], 24
    %v1156 = vld [vmem:[%s1155] sm:$0xf]
    %v1157 = vpack.c.bf16 %v1153, %v1153
    %1158 = vmatprep.subr.bf16.mxu0 %v359
    %1159 = vmatpush1.bf16.msra.mxu0 %v358
    %1160 = vmatprep.subr.bf16.mxu0 %v363
    %1161 = vmatpush1.bf16.msra.mxu0 %v362
    %1162 = vmatprep.subr.bf16.mxu0 %v367
    %1163 = vmatpush1.bf16.msra.mxu0 %v366
    %1164 = vmatprep.subr.bf16.mxu0 %v371
    %1165 = vmatpush1.bf16.msra.mxu0 %v370
    %1166 = vmatprep.subr.bf16.mxu0 %v375
    %1167 = vmatpush1.bf16.msra.mxu0 %v374
    %1168 = vmatprep.subr.bf16.mxu0 %v379
    %1169 = vmatpush1.bf16.msra.mxu0 %v378
    %1170 = vmatprep.subr.bf16.mxu0 %v383
    %1171 = vmatpush1.bf16.msra.mxu0 %v382
    %1172 = vmatprep.subr.bf16.mxu0 %v387
    %1173 = vmatpush1.bf16.msra.mxu0 %v386
    %1174 = vmatprep.subr.bf16.mxu0 %v391
    %1175 = vmatpush1.bf16.msra.mxu0 %v390
    %1176 = vmatprep.subr.bf16.mxu0 %v395
    %1177 = vmatpush1.bf16.msra.mxu0 %v394
    %1178 = vmatprep.subr.bf16.mxu0 %v399
    %1179 = vmatpush1.bf16.msra.mxu0 %v398
    %1180 = vmatprep.subr.bf16.mxu0 %v403
    %1181 = vmatpush1.bf16.msra.mxu0 %v402
    %1182 = vmatprep.subr.bf16.mxu0 %v407
    %1183 = vmatpush1.bf16.msra.mxu0 %v406
    %1184 = vmatprep.subr.bf16.mxu0 %v411
    %1185 = vmatpush1.bf16.msra.mxu0 %v410
    %1186 = vmatprep.subr.bf16.mxu0 %v415
    %1187 = vmatpush1.bf16.msra.mxu0 %v414
    %1188 = vmatprep.subr.bf16.mxu0 %v419
    %1189 = vmatpush1.bf16.msra.mxu0 %v418
    %1190 = vmatprep.mubr.bf16.mxu0 %v1157
    %1191 = vmatmul.mubr.bf16.gmra.mrb[0].mxu0 %v1156
    %v1192 = vpop.f32.mrb[0].mxu0
    %v1193 = vadd.f32 %v148, %v1192
    %v1194 = vpop.f32.mrb[0].mxu0
    %v1195 = vadd.f32 %v152, %v1194
    %v1196 = vpop.f32.mrb[0].mxu0
    %v1197 = vpop.f32.mrb[0].mxu0
    %1198 = vdwg.mxu0
    %1199 = vmatprep.subr.bf16.mxu0 %v361
    %1200 = vmatpush1.bf16.msra.mxu0 %v360
    %1201 = vmatprep.subr.bf16.mxu0 %v365
    %1202 = vmatpush1.bf16.msra.mxu0 %v364
    %1203 = vmatprep.subr.bf16.mxu0 %v369
    %1204 = vmatpush1.bf16.msra.mxu0 %v368
    %1205 = vmatprep.subr.bf16.mxu0 %v373
    %1206 = vmatpush1.bf16.msra.mxu0 %v372
    %1207 = vmatprep.subr.bf16.mxu0 %v377
    %1208 = vmatpush1.bf16.msra.mxu0 %v376
    %1209 = vmatprep.subr.bf16.mxu0 %v381
    %1210 = vmatpush1.bf16.msra.mxu0 %v380
    %1211 = vmatprep.subr.bf16.mxu0 %v385
    %1212 = vmatpush1.bf16.msra.mxu0 %v384
    %1213 = vmatprep.subr.bf16.mxu0 %v389
    %1214 = vmatpush1.bf16.msra.mxu0 %v388
    %1215 = vmatprep.subr.bf16.mxu0 %v393
    %1216 = vmatpush1.bf16.msra.mxu0 %v392
    %1217 = vmatprep.subr.bf16.mxu0 %v397
    %1218 = vmatpush1.bf16.msra.mxu0 %v396
    %1219 = vmatprep.subr.bf16.mxu0 %v401
    %1220 = vmatpush1.bf16.msra.mxu0 %v400
    %1221 = vmatprep.subr.bf16.mxu0 %v405
    %1222 = vmatpush1.bf16.msra.mxu0 %v404
    %1223 = vmatprep.subr.bf16.mxu0 %v409
    %1224 = vmatpush1.bf16.msra.mxu0 %v408
    %1225 = vmatprep.subr.bf16.mxu0 %v413
    %1226 = vmatpush1.bf16.msra.mxu0 %v412
    %1227 = vmatprep.subr.bf16.mxu0 %v417
    %1228 = vmatpush1.bf16.msra.mxu0 %v416
    %1229 = vmatprep.subr.bf16.mxu0 %v421
    %1230 = vmatpush1.bf16.msra.mxu0 %v420
    %1231 = vmatprep.mubr.bf16.mxu0 %v1157
    %1232 = vmatmul.mubr.bf16.gmra.mrb[0].mxu0 %v1156
    %v1233 = vpop.f32.mrb[0].mxu0
    %v1234 = vadd.f32 %v156, %v1233
    %v1235 = vpop.f32.mrb[0].mxu0
    %v1236 = vadd.f32 %v160, %v1235
    %v1237 = vpop.f32.mrb[0].mxu0
    %v1238 = vpop.f32.mrb[0].mxu0
    %1239 = vdwg.mxu0
    %v1240 = vxor.u32 %v1193, 2147483648
    %v1241 = vmul.f32 %v1240, 1.442695
    %v1242 = vpow.pop %v1241
    %v1243 = vadd.f32 %v1242, 1.0
    %v1244 = vrcp.pop %v1243
    %v1245 = vmul.f32 1.0, %v1244
    %v1246 = vxor.u32 %v1195, 2147483648
    %v1247 = vmul.f32 %v1246, 1.442695
    %v1248 = vpow.pop %v1247
    %v1249 = vadd.f32 %v1248, 1.0
    %v1250 = vrcp.pop %v1249
    %v1251 = vmul.f32 1.0, %v1250
    %v1252 = vtanh.pop %v1234
    %v1253 = vxor.u32 %v1236, 2147483648
    %v1254 = vmul.f32 %v1253, 1.442695
    %v1255 = vpow.pop %v1254
    %v1256 = vadd.f32 %v1255, 1.0
    %v1257 = vrcp.pop %v1256
    %v1258 = vmul.f32 1.0, %v1257
    %v1259 = vmul.f32 %v1251, %v1154
    %v1260 = vmul.f32 %v1245, %v1252
    %v1261 = vadd.f32 %v1259, %v1260
    %v1262 = vtanh.pop %v1261
    %v1263 = vmul.f32 %v1258, %v1262
    %vm1264 = vcmp.gt.s32.totalorder %v78, 6
    %v1265 = vsel %vm1264, %v1263, %v1153
    %v1266 = vsel %vm1264, %v1261, %v1154
    %s1267 = scalar_lea.vmem [#allocation2], 28
    %v1268 = vld [vmem:[%s1267] sm:$0xf]
    %v1269 = vpack.c.bf16 %v1265, %v1265
    %1270 = vmatprep.subr.bf16.mxu0 %v359
    %1271 = vmatpush1.bf16.msra.mxu0 %v358
    %1272 = vmatprep.subr.bf16.mxu0 %v363
    %1273 = vmatpush1.bf16.msra.mxu0 %v362
    %1274 = vmatprep.subr.bf16.mxu0 %v367
    %1275 = vmatpush1.bf16.msra.mxu0 %v366
    %1276 = vmatprep.subr.bf16.mxu0 %v371
    %1277 = vmatpush1.bf16.msra.mxu0 %v370
    %1278 = vmatprep.subr.bf16.mxu0 %v375
    %1279 = vmatpush1.bf16.msra.mxu0 %v374
    %1280 = vmatprep.subr.bf16.mxu0 %v379
    %1281 = vmatpush1.bf16.msra.mxu0 %v378
    %1282 = vmatprep.subr.bf16.mxu0 %v383
    %1283 = vmatpush1.bf16.msra.mxu0 %v382
    %1284 = vmatprep.subr.bf16.mxu0 %v387
    %1285 = vmatpush1.bf16.msra.mxu0 %v386
    %1286 = vmatprep.subr.bf16.mxu0 %v391
    %1287 = vmatpush1.bf16.msra.mxu0 %v390
    %1288 = vmatprep.subr.bf16.mxu0 %v395
    %1289 = vmatpush1.bf16.msra.mxu0 %v394
    %1290 = vmatprep.subr.bf16.mxu0 %v399
    %1291 = vmatpush1.bf16.msra.mxu0 %v398
    %1292 = vmatprep.subr.bf16.mxu0 %v403
    %1293 = vmatpush1.bf16.msra.mxu0 %v402
    %1294 = vmatprep.subr.bf16.mxu0 %v407
    %1295 = vmatpush1.bf16.msra.mxu0 %v406
    %1296 = vmatprep.subr.bf16.mxu0 %v411
    %1297 = vmatpush1.bf16.msra.mxu0 %v410
    %1298 = vmatprep.subr.bf16.mxu0 %v415
    %1299 = vmatpush1.bf16.msra.mxu0 %v414
    %1300 = vmatprep.subr.bf16.mxu0 %v419
    %1301 = vmatpush1.bf16.msra.mxu0 %v418
    %1302 = vmatprep.mubr.bf16.mxu0 %v1269
    %1303 = vmatmul.mubr.bf16.gmra.mrb[0].mxu0 %v1268
    %v1304 = vpop.f32.mrb[0].mxu0
    %v1305 = vadd.f32 %v148, %v1304
    %v1306 = vpop.f32.mrb[0].mxu0
    %v1307 = vadd.f32 %v152, %v1306
    %v1308 = vpop.f32.mrb[0].mxu0
    %v1309 = vpop.f32.mrb[0].mxu0
    %1310 = vdwg.mxu0
    %1311 = vmatprep.subr.bf16.mxu0 %v361
    %1312 = vmatpush1.bf16.msra.mxu0 %v360
    %1313 = vmatprep.subr.bf16.mxu0 %v365
    %1314 = vmatpush1.bf16.msra.mxu0 %v364
    %1315 = vmatprep.subr.bf16.mxu0 %v369
    %1316 = vmatpush1.bf16.msra.mxu0 %v368
    %1317 = vmatprep.subr.bf16.mxu0 %v373
    %1318 = vmatpush1.bf16.msra.mxu0 %v372
    %1319 = vmatprep.subr.bf16.mxu0 %v377
    %1320 = vmatpush1.bf16.msra.mxu0 %v376
    %1321 = vmatprep.subr.bf16.mxu0 %v381
    %1322 = vmatpush1.bf16.msra.mxu0 %v380
    %1323 = vmatprep.subr.bf16.mxu0 %v385
    %1324 = vmatpush1.bf16.msra.mxu0 %v384
    %1325 = vmatprep.subr.bf16.mxu0 %v389
    %1326 = vmatpush1.bf16.msra.mxu0 %v388
    %1327 = vmatprep.subr.bf16.mxu0 %v393
    %1328 = vmatpush1.bf16.msra.mxu0 %v392
    %1329 = vmatprep.subr.bf16.mxu0 %v397
    %1330 = vmatpush1.bf16.msra.mxu0 %v396
    %1331 = vmatprep.subr.bf16.mxu0 %v401
    %1332 = vmatpush1.bf16.msra.mxu0 %v400
    %1333 = vmatprep.subr.bf16.mxu0 %v405
    %1334 = vmatpush1.bf16.msra.mxu0 %v404
    %1335 = vmatprep.subr.bf16.mxu0 %v409
    %1336 = vmatpush1.bf16.msra.mxu0 %v408
    %1337 = vmatprep.subr.bf16.mxu0 %v413
    %1338 = vmatpush1.bf16.msra.mxu0 %v412
    %1339 = vmatprep.subr.bf16.mxu0 %v417
    %1340 = vmatpush1.bf16.msra.mxu0 %v416
    %1341 = vmatprep.subr.bf16.mxu0 %v421
    %1342 = vmatpush1.bf16.msra.mxu0 %v420
    %1343 = vmatprep.mubr.bf16.mxu0 %v1269
    %1344 = vmatmul.mubr.bf16.gmra.mrb[0].mxu0 %v1268
    %v1345 = vpop.f32.mrb[0].mxu0
    %v1346 = vadd.f32 %v156, %v1345
    %v1347 = vpop.f32.mrb[0].mxu0
    %v1348 = vadd.f32 %v160, %v1347
    %v1349 = vpop.f32.mrb[0].mxu0
    %v1350 = vpop.f32.mrb[0].mxu0
    %1351 = vdwg.mxu0
    %v1352 = vxor.u32 %v1305, 2147483648
    %v1353 = vmul.f32 %v1352, 1.442695
    %v1354 = vpow.pop %v1353
    %v1355 = vadd.f32 %v1354, 1.0
    %v1356 = vrcp.pop %v1355
    %v1357 = vmul.f32 1.0, %v1356
    %v1358 = vxor.u32 %v1307, 2147483648
    %v1359 = vmul.f32 %v1358, 1.442695
    %v1360 = vpow.pop %v1359
    %v1361 = vadd.f32 %v1360, 1.0
    %v1362 = vrcp.pop %v1361
    %v1363 = vmul.f32 1.0, %v1362
    %v1364 = vtanh.pop %v1346
    %v1365 = vxor.u32 %v1348, 2147483648
    %v1366 = vmul.f32 %v1365, 1.442695
    %v1367 = vpow.pop %v1366
    %v1368 = vadd.f32 %v1367, 1.0
    %v1369 = vrcp.pop %v1368
    %v1370 = vmul.f32 1.0, %v1369
    %v1371 = vmul.f32 %v1363, %v1266
    %v1372 = vmul.f32 %v1357, %v1364
    %v1373 = vadd.f32 %v1371, %v1372
    %v1374 = vtanh.pop %v1373
    %v1375 = vmul.f32 %v1370, %v1374
    %vm1376 = vcmp.gt.s32.totalorder %v78, 7
    %v1377 = vsel %vm1376, %v1375, %v1265
    %v1378 = vpack.c.bf16 %v1377, %v1377
    %v1379 = vld [vmem:[#allocation8] sm:$0xf]
    %v1380 = vld [vmem:[#allocation8 + $0x4] sm:$0xf]
    %v1381 = vld [vmem:[#allocation8 + $0x8] sm:$0xf]
    %v1382 = vld [vmem:[#allocation8 + $0xc] sm:$0xf]
    %v1383 = vld [vmem:[#allocation8 + $0x10] sm:$0xf]
    %v1384 = vld [vmem:[#allocation8 + $0x14] sm:$0xf]
    %v1385 = vld [vmem:[#allocation8 + $0x18] sm:$0xf]
    %v1386 = vld [vmem:[#allocation8 + $0x1c] sm:$0xf]
    %v1387 = vld [vmem:[#allocation8 + $0x20] sm:$0xf]
    %v1388 = vld [vmem:[#allocation8 + $0x24] sm:$0xf]
    %v1389 = vld [vmem:[#allocation8 + $0x28] sm:$0xf]
    %v1390 = vld [vmem:[#allocation8 + $0x2c] sm:$0xf]
    %v1391 = vld [vmem:[#allocation8 + $0x30] sm:$0xf]
    %v1392 = vld [vmem:[#allocation8 + $0x34] sm:$0xf]
    %v1393 = vld [vmem:[#allocation8 + $0x38] sm:$0xf]
    %v1394 = vld [vmem:[#allocation8 + $0x3c] sm:$0xf]
    %v1395 = vld [vmem:[%s5] sm:$0x1]
    %v1397 = vlaneseq
    %v1398 = vshrl.u32 %v1397, 7
    %v1399 = vsub.s32 0, %v1398
    %v1400 = vrot.slane %v1395, %v1399
    %v1418 = vunpack.c.l.b16 %v1379
    %v1419 = vunpack.c.l.b16 %v1380
    %v1420 = vunpack.c.l.b16 %v1381
    %v1421 = vunpack.c.l.b16 %v1382
    %v1422 = vunpack.c.l.b16 %v1383
    %v1423 = vunpack.c.l.b16 %v1384
    %v1424 = vunpack.c.l.b16 %v1385
    %v1425 = vunpack.c.l.b16 %v1386
    %v1426 = vunpack.c.l.b16 %v1387
    %v1427 = vunpack.c.l.b16 %v1388
    %v1428 = vunpack.c.l.b16 %v1389
    %v1429 = vunpack.c.l.b16 %v1390
    %v1430 = vunpack.c.l.b16 %v1391
    %v1431 = vunpack.c.l.b16 %v1392
    %v1432 = vunpack.c.l.b16 %v1393
    %v1433 = vunpack.c.l.b16 %v1394
    %v1434 = vpack.c.b16 %v1419, %v1418
    %v1435 = vpack.c.b16 %v1421, %v1420
    %v1436 = vpack.c.b16 %v1423, %v1422
    %v1437 = vpack.c.b16 %v1425, %v1424
    %v1438 = vpack.c.b16 %v1427, %v1426
    %v1439 = vpack.c.b16 %v1429, %v1428
    %v1440 = vpack.c.b16 %v1431, %v1430
    %v1441 = vpack.c.b16 %v1433, %v1432
    %1450 = vmatprep.subr.bf16.mxu0 0
    %1451 = vmatpush1.bf16.msra.mxu0 %v1434
    %1452 = vmatprep.subr.bf16.mxu0 0
    %1453 = vmatpush1.bf16.msra.mxu0 %v1435
    %1454 = vmatprep.subr.bf16.mxu0 0
    %1455 = vmatpush1.bf16.msra.mxu0 %v1436
    %1456 = vmatprep.subr.bf16.mxu0 0
    %1457 = vmatpush1.bf16.msra.mxu0 %v1437
    %1458 = vmatprep.subr.bf16.mxu0 0
    %1459 = vmatpush1.bf16.msra.mxu0 %v1438
    %1460 = vmatprep.subr.bf16.mxu0 0
    %1461 = vmatpush1.bf16.msra.mxu0 %v1439
    %1462 = vmatprep.subr.bf16.mxu0 0
    %1463 = vmatpush1.bf16.msra.mxu0 %v1440
    %1464 = vmatprep.subr.bf16.mxu0 0
    %1465 = vmatpush1.bf16.msra.mxu0 %v1441
    %1466 = vmatprep.subr.bf16.mxu0 0
    %1467 = vmatpush1.bf16.msra.mxu0 0
    %1468 = vmatprep.subr.bf16.mxu0 0
    %1469 = vmatpush1.bf16.msra.mxu0 0
    %1470 = vmatprep.subr.bf16.mxu0 0
    %1471 = vmatpush1.bf16.msra.mxu0 0
    %1472 = vmatprep.subr.bf16.mxu0 0
    %1473 = vmatpush1.bf16.msra.mxu0 0
    %1474 = vmatprep.subr.bf16.mxu0 0
    %1475 = vmatpush1.bf16.msra.mxu0 0
    %1476 = vmatprep.subr.bf16.mxu0 0
    %1477 = vmatpush1.bf16.msra.mxu0 0
    %1478 = vmatprep.subr.bf16.mxu0 0
    %1479 = vmatpush1.bf16.msra.mxu0 0
    %1480 = vmatprep.subr.bf16.mxu0 0
    %1481 = vmatpush1.bf16.msra.mxu0 0
    %1482 = vmatprep.mubr.bf16.mxu0 0
    %1483 = vmatmul.mubr.bf16.gmra.mrb[0].mxu0 %v1378
    %v1484 = vpop.f32.mrb[0].mxu0
    %v1485 = vadd.f32 %v1400, %v1484
    %v1486 = vpop.f32.mrb[0].mxu0
    %v1487 = vpop.f32.mrb[0].mxu0
    %v1488 = vpop.f32.mrb[0].mxu0
    %1489 = vdwg.mxu0
    %1490 = vst [vmem:[#allocation10] sm:$0xff] %v1485
    // Predicated region
    $region42: #{tpu_custom_call.1} parent=1 // pred_check
      _
    $region43: #{tpu_custom_call.1} parent=1 // pred_check_branch
      %1492 = sbr.rel (0) target = $region45
    $region44: #{tpu_custom_call.1} parent=1 // pred_region
      %s1494 = ssub.s32 128, 128
      %1495 = vsyncadd [#allocation4], %s1494
      %s1497 = sshll.u32 [#allocation10], 4
      %s1498 = int_to_ptr.vmem [resolvable:$true] %s1497
      %1500 = dma.vmem_to_hbm [thread:$0]  %s1498, 128, %s6, [#allocation4]
    $region45: #{tpu_custom_call.1} parent=1 // pred_fallthru
      _
    // Predicated region
    $region46: #{tpu_custom_call.1} parent=1 // pred_check
      _
    $region47: #{tpu_custom_call.1} parent=1 // pred_check_branch
      %1502 = sbr.rel (0) target = $region49
    $region48: #{tpu_custom_call.1} parent=1 // pred_region
      %1503 = dma.done [#allocation4], 128
    $region49: #{tpu_custom_call.1} parent=1 // pred_fallthru
      _
    %1504 = vsyncpa [#allocation3], 1
    %1505 = vsyncpa [#allocation6], 1
    %1506 = vsyncpa [#allocation9], 1
    %1507 = vsyncpa [#allocation4], 1

</llo_original>
